<compile_context>
chip_gen: v5e
topology: v5e:2x2
jax: 0.10.0
libtpu: 0.0.40
codegen_flags: <defaults>
</compile_context>

<pallas_src>
import jax
import jax.numpy as jnp
from jax.experimental import pallas as pl
from jax.experimental.pallas import tpu as pltpu


# ----------------------------------------------------------------------------
# Pallas kernel: whole forward pass on-chip, single grid point (everything fits
# in VMEM at these sizes; whole-array VMEM BlockSpecs).
# ----------------------------------------------------------------------------
def seq2seq_kernel(x_ref,       # (T*B, D)     time-major flattened input
                   wih1_ref,    # (D, 4H)      seq1 W_ih^T
                   whh1_ref,    # (H, 4H)      seq1 W_hh^T
                   b1_ref,      # (1, 4H)      seq1 b_ih + b_hh
                   wcomb_ref,   # (T*H, T*4H)  lin12 folded into seq2 W_ih
                   bcomb_ref,   # (1, T*4H)    folded bias (blin@Wih2 + b2)
                   whh2_ref,    # (H, 4H)      seq2 W_hh^T
                   y_ref,       # (B, T*H)     lane-dense output
                   t_scr):      # VMEM (B, T*H) seq1 hiddens, lane-dense
    TB, D = x_ref.shape
    H = whh1_ref.shape[0]
    TH = t_scr.shape[1]
    T = TH // H
    B = TB // T

    def lstm_cell(gates_in, h, c, whh):
        # Only the recurrent projection remains on the serial dependency chain.
        gates = gates_in + jnp.dot(h, whh, preferred_element_type=jnp.float32)
        sig = jax.nn.sigmoid(gates)                 # one full-tile EUP pass
        i = sig[:, 0 * H:1 * H]
        f = sig[:, 1 * H:2 * H]
        o = sig[:, 3 * H:4 * H]
        g = jnp.tanh(gates[:, 2 * H:3 * H])
        c_new = f * c + i * g
        h_new = o * jnp.tanh(c_new)
        return h_new, c_new

    # ---- seq1: input projection hoisted to a single GEMM (bias folded in) ----
    gates1 = (jnp.dot(x_ref[...], wih1_ref[...],
                      preferred_element_type=jnp.float32)
              + b1_ref[...])                        # (T*B, 4H)
    whh1 = whh1_ref[...]
    h = jnp.zeros((B, H), jnp.float32)
    c = jnp.zeros((B, H), jnp.float32)
    for ti in range(T):          # small static T, unrolled; h/c live in vregs
        h, c = lstm_cell(gates1[ti * B:(ti + 1) * B, :], h, c, whh1)
        t_scr[:, ti * H:(ti + 1) * H] = h           # lane-dense scratch write

    # ---- lin12 ∘ seq2 input projection: ONE 256-deep GEMM, z never built ----
    gates2 = (jnp.dot(t_scr[...], wcomb_ref[...],
                      preferred_element_type=jnp.float32)
              + bcomb_ref[...])                     # (B, T*4H)

    # ---- seq2: seeded with seq1's final (h, c) already held in h/c ----
    whh2 = whh2_ref[...]
    for ti in range(T):
        h, c = lstm_cell(gates2[:, ti * 4 * H:(ti + 1) * 4 * H], h, c, whh2)
        y_ref[:, ti * H:(ti + 1) * H] = h


# ----------------------------------------------------------------------------
# Wrapper: layout glue + one-time weight folding + pallas_call plumbing.
# ----------------------------------------------------------------------------
def seq2seq_v3_pallas(x, params):
    """x: (B, T, D) float32, batch_first like the PyTorch module."""
    B, T, D = x.shape
    H = params["whh1_t"].shape[0]

    # Time-major flatten so the seq1 input projection is one GEMM in-kernel.
    x_flat = jnp.transpose(x, (1, 0, 2)).reshape(T * B, D)

    # Fold lin12 (T*H -> T*H) into seq2's input-gate projection (one-time cost):
    #   Wcomb[:, ti*4H:(ti+1)*4H] = Wlin[:, ti*H:(ti+1)*H] @ Wih2
    #   bcomb[:, ti*4H:(ti+1)*4H] = blin[:, ti*H:(ti+1)*H] @ Wih2 + b2
    wlin2 = params["wlin2"]                 # (T*H, T*H)
    wih2_t = params["wih2_t"]               # (H, 4H)
    wcomb = jnp.einsum("kth,hg->ktg",
                       wlin2.reshape(T * H, T, H),
                       wih2_t).reshape(T * H, T * 4 * H)
    bcomb = (params["blin"].reshape(T, H) @ wih2_t
             + params["b2"]).reshape(1, T * 4 * H)

    vmem = lambda: pl.BlockSpec(memory_space=pltpu.MemorySpace.VMEM)

    y_flat = pl.pallas_call(
        seq2seq_kernel,
        out_shape=jax.ShapeDtypeStruct((B, T * H), jnp.float32),
        in_specs=[vmem() for _ in range(7)],
        out_specs=vmem(),
        scratch_shapes=[pltpu.VMEM((B, T * H), jnp.float32)],   # seq1 hiddens
    )(x_flat,
      params["wih1_t"], params["whh1_t"], params["b1"],
      wcomb, bcomb, params["whh2_t"])

    return y_flat.reshape(B, T, H)          # contiguous split, no transpose


# ----------------------------------------------------------------------------
# Pure-JAX reference (mirrors torch semantics, unfolded lin12) for correctness.
# ----------------------------------------------------------------------------
def _lstm_ref(x, wih_t, whh_t, b, h0, c0):
    H = whh_t.shape[0]

    def step(carry, x_t):
        h, c = carry
        gates = x_t @ wih_t + h @ whh_t + b
        i = jax.nn.sigmoid(gates[:, 0 * H:1 * H])
        f = jax.nn.sigmoid(gates[:, 1 * H:2 * H])
        g = jnp.tanh(gates[:, 2 * H:3 * H])
        o = jax.nn.sigmoid(gates[:, 3 * H:4 * H])
        c = f * c + i * g
        h = o * jnp.tanh(c)
        return (h, c), h

    (h, c), hs = jax.lax.scan(step, (h0, c0), jnp.transpose(x, (1, 0, 2)))
    return jnp.transpose(hs, (1, 0, 2)), (h, c)


def seq2seq_v3_ref(x, params):
    B, T, D = x.shape
    H = params["whh1_t"].shape[0]
    z0 = jnp.zeros((B, H), jnp.float32)
    t, (h, c) = _lstm_ref(x, params["wih1_t"], params["whh1_t"],
                          params["b1"], z0, z0)
    z_flat = t.reshape(B, T * H) @ params["wlin2"] + params["blin"]
    z = z_flat.reshape(B, T, H)
    y, _ = _lstm_ref(z, params["wih2_t"], params["whh2_t"], params["b2"], h, c)
    return y


# ----------------------------------------------------------------------------
# Deterministic parameter init (PyTorch-style uniform(-1/sqrt(fan), 1/sqrt(fan)))
# ----------------------------------------------------------------------------
def init_params(key, T, D, H):
    ks = jax.random.split(key, 10)
    kl = 1.0 / jnp.sqrt(H)
    u = lambda k, shape, bound: jax.random.uniform(
        k, shape, jnp.float32, -bound, bound)

    # seq1 (stored transposed: (in, 4H)); combined bias b_ih + b_hh
    wih1_t = u(ks[0], (D, 4 * H), kl)
    whh1_t = u(ks[1], (H, 4 * H), kl)
    b1 = u(ks[2], (1, 4 * H), kl) + u(ks[3], (1, 4 * H), kl)

    # lin12: dense (T*H -> T*H)
    klin = 1.0 / jnp.sqrt(T * H)
    wlin2 = u(ks[4], (T * H, T * H), klin)        # (in, out)
    blin = u(ks[5], (1, T * H), klin)

    # seq2
    wih2_t = u(ks[6], (H, 4 * H), kl)
    whh2_t = u(ks[7], (H, 4 * H), kl)
    b2 = u(ks[8], (1, 4 * H), kl) + u(ks[9], (1, 4 * H), kl)

    return dict(
        wih1_t=wih1_t, whh1_t=whh1_t, b1=b1,
        wlin2=wlin2, blin=blin,
        wih2_t=wih2_t, whh2_t=whh2_t, b2=b2,
    )


if __name__ == "__main__":
    B, T, D, H = 2, 8, 32, 32          # input_shape=(8,32), output_shape=(8,32)

    key = jax.random.PRNGKey(0)
    kx, kp = jax.random.split(key)
    x = jax.random.normal(kx, (B, T, D), jnp.float32)
    params = init_params(kp, T, D, H)

    y = seq2seq_v3_pallas(x, params)
    y = jax.block_until_ready(y)

    y_ref = seq2seq_v3_ref(x, params)
    assert y.shape == (B, T, H)
    assert jnp.allclose(y, y_ref, atol=1e-3, rtol=1e-3), "mismatch vs reference"

    print("KERNEL_OK")
</pallas_src>

<mosaic_0001>
module attributes {stable_mosaic.version = 11 : i64} {
  func.func @seq2seq_kernel(%arg0: memref<16x32xf32, #tpu.memory_space<vmem>>, %arg1: memref<32x128xf32, #tpu.memory_space<vmem>>, %arg2: memref<32x128xf32, #tpu.memory_space<vmem>>, %arg3: memref<1x128xf32, #tpu.memory_space<vmem>>, %arg4: memref<256x1024xf32, #tpu.memory_space<vmem>>, %arg5: memref<1x1024xf32, #tpu.memory_space<vmem>>, %arg6: memref<32x128xf32, #tpu.memory_space<vmem>>, %arg7: memref<2x256xf32, #tpu.memory_space<vmem>>, %arg8: memref<2x256xf32, #tpu.memory_space<vmem>>) attributes {dimension_semantics = [], scalar_prefetch = 0 : i64, scratch_operands = 1 : i64, tpu.core_type = #tpu.core_type<tc>} {
    %c0 = arith.constant 0 : index
    %c0_0 = arith.constant 0 : index
    %0 = vector.load %arg0[%c0, %c0_0] : memref<16x32xf32, #tpu.memory_space<vmem>>, vector<16x32xf32>
    %c0_1 = arith.constant 0 : index
    %c0_2 = arith.constant 0 : index
    %1 = vector.load %arg1[%c0_1, %c0_2] : memref<32x128xf32, #tpu.memory_space<vmem>>, vector<32x128xf32>
    %cst = arith.constant dense<0.000000e+00> : vector<16x128xf32>
    %2 = tpu.matmul %0, %1, %cst {dimension_numbers = #tpu.dot_dimension_numbers<[1], [0], [0], [1], [0, 0, 1, 1], [], []>} : vector<16x32xf32>, vector<32x128xf32>, vector<16x128xf32> -> vector<16x128xf32>
    %c0_3 = arith.constant 0 : index
    %c0_4 = arith.constant 0 : index
    %3 = vector.load %arg3[%c0_3, %c0_4] : memref<1x128xf32, #tpu.memory_space<vmem>>, vector<1x128xf32>
    %4 = vector.broadcast %3 : vector<1x128xf32> to vector<16x128xf32>
    %5 = arith.addf %2, %4 : vector<16x128xf32>
    %c0_5 = arith.constant 0 : index
    %c0_6 = arith.constant 0 : index
    %6 = vector.load %arg2[%c0_5, %c0_6] : memref<32x128xf32, #tpu.memory_space<vmem>>, vector<32x128xf32>
    %cst_7 = arith.constant 0.000000e+00 : f32
    %7 = vector.broadcast %cst_7 : f32 to vector<2x32xf32>
    %cst_8 = arith.constant 0.000000e+00 : f32
    %8 = vector.broadcast %cst_8 : f32 to vector<2x32xf32>
    %9 = vector.extract_strided_slice %5 {offsets = [0, 0], sizes = [2, 128], strides = [1, 1]} : vector<16x128xf32> to vector<2x128xf32>
    %cst_9 = arith.constant dense<0.000000e+00> : vector<2x128xf32>
    %10 = tpu.matmul %7, %6, %cst_9 {dimension_numbers = #tpu.dot_dimension_numbers<[1], [0], [0], [1], [0, 0, 1, 1], [], []>} : vector<2x32xf32>, vector<32x128xf32>, vector<2x128xf32> -> vector<2x128xf32>
    %11 = arith.addf %9, %10 : vector<2x128xf32>
    %12 = arith.negf %11 : vector<2x128xf32>
    %13 = math.exp %12 : vector<2x128xf32>
    %cst_10 = arith.constant 1.000000e+00 : f32
    %14 = vector.broadcast %cst_10 : f32 to vector<2x128xf32>
    %15 = arith.addf %14, %13 : vector<2x128xf32>
    %16 = arith.divf %14, %15 : vector<2x128xf32>
    %17 = vector.extract_strided_slice %16 {offsets = [0, 0], sizes = [2, 32], strides = [1, 1]} : vector<2x128xf32> to vector<2x32xf32>
    %18 = vector.extract_strided_slice %16 {offsets = [0, 32], sizes = [2, 32], strides = [1, 1]} : vector<2x128xf32> to vector<2x32xf32>
    %19 = vector.extract_strided_slice %16 {offsets = [0, 96], sizes = [2, 32], strides = [1, 1]} : vector<2x128xf32> to vector<2x32xf32>
    %20 = vector.extract_strided_slice %11 {offsets = [0, 64], sizes = [2, 32], strides = [1, 1]} : vector<2x128xf32> to vector<2x32xf32>
    %21 = math.tanh %20 : vector<2x32xf32>
    %22 = arith.mulf %18, %8 : vector<2x32xf32>
    %23 = arith.mulf %17, %21 : vector<2x32xf32>
    %24 = arith.addf %22, %23 : vector<2x32xf32>
    %25 = math.tanh %24 : vector<2x32xf32>
    %26 = arith.mulf %19, %25 : vector<2x32xf32>
    %c0_11 = arith.constant 0 : index
    %c0_12 = arith.constant 0 : index
    %27 = vector.load %arg8[%c0_11, %c0_12] : memref<2x256xf32, #tpu.memory_space<vmem>>, vector<2x32xf32>
    tpu.vector_store %arg8[%c0_11, %c0_12], %26 {strides = array<i32>} : memref<2x256xf32, #tpu.memory_space<vmem>>, vector<2x32xf32>,
    %28 = vector.extract_strided_slice %5 {offsets = [2, 0], sizes = [2, 128], strides = [1, 1]} : vector<16x128xf32> to vector<2x128xf32>
    %cst_13 = arith.constant dense<0.000000e+00> : vector<2x128xf32>
    %29 = tpu.matmul %26, %6, %cst_13 {dimension_numbers = #tpu.dot_dimension_numbers<[1], [0], [0], [1], [0, 0, 1, 1], [], []>} : vector<2x32xf32>, vector<32x128xf32>, vector<2x128xf32> -> vector<2x128xf32>
    %30 = arith.addf %28, %29 : vector<2x128xf32>
    %31 = arith.negf %30 : vector<2x128xf32>
    %32 = math.exp %31 : vector<2x128xf32>
    %cst_14 = arith.constant 1.000000e+00 : f32
    %33 = vector.broadcast %cst_14 : f32 to vector<2x128xf32>
    %34 = arith.addf %33, %32 : vector<2x128xf32>
    %35 = arith.divf %33, %34 : vector<2x128xf32>
    %36 = vector.extract_strided_slice %35 {offsets = [0, 0], sizes = [2, 32], strides = [1, 1]} : vector<2x128xf32> to vector<2x32xf32>
    %37 = vector.extract_strided_slice %35 {offsets = [0, 32], sizes = [2, 32], strides = [1, 1]} : vector<2x128xf32> to vector<2x32xf32>
    %38 = vector.extract_strided_slice %35 {offsets = [0, 96], sizes = [2, 32], strides = [1, 1]} : vector<2x128xf32> to vector<2x32xf32>
    %39 = vector.extract_strided_slice %30 {offsets = [0, 64], sizes = [2, 32], strides = [1, 1]} : vector<2x128xf32> to vector<2x32xf32>
    %40 = math.tanh %39 : vector<2x32xf32>
    %41 = arith.mulf %37, %24 : vector<2x32xf32>
    %42 = arith.mulf %36, %40 : vector<2x32xf32>
    %43 = arith.addf %41, %42 : vector<2x32xf32>
    %44 = math.tanh %43 : vector<2x32xf32>
    %45 = arith.mulf %38, %44 : vector<2x32xf32>
    %c0_15 = arith.constant 0 : index
    %c32 = arith.constant 32 : index
    %46 = vector.load %arg8[%c0_15, %c32] : memref<2x256xf32, #tpu.memory_space<vmem>>, vector<2x32xf32>
    tpu.vector_store %arg8[%c0_15, %c32], %45 {strides = array<i32>} : memref<2x256xf32, #tpu.memory_space<vmem>>, vector<2x32xf32>,
    %47 = vector.extract_strided_slice %5 {offsets = [4, 0], sizes = [2, 128], strides = [1, 1]} : vector<16x128xf32> to vector<2x128xf32>
    %cst_16 = arith.constant dense<0.000000e+00> : vector<2x128xf32>
    %48 = tpu.matmul %45, %6, %cst_16 {dimension_numbers = #tpu.dot_dimension_numbers<[1], [0], [0], [1], [0, 0, 1, 1], [], []>} : vector<2x32xf32>, vector<32x128xf32>, vector<2x128xf32> -> vector<2x128xf32>
    %49 = arith.addf %47, %48 : vector<2x128xf32>
    %50 = arith.negf %49 : vector<2x128xf32>
    %51 = math.exp %50 : vector<2x128xf32>
    %cst_17 = arith.constant 1.000000e+00 : f32
    %52 = vector.broadcast %cst_17 : f32 to vector<2x128xf32>
    %53 = arith.addf %52, %51 : vector<2x128xf32>
    %54 = arith.divf %52, %53 : vector<2x128xf32>
    %55 = vector.extract_strided_slice %54 {offsets = [0, 0], sizes = [2, 32], strides = [1, 1]} : vector<2x128xf32> to vector<2x32xf32>
    %56 = vector.extract_strided_slice %54 {offsets = [0, 32], sizes = [2, 32], strides = [1, 1]} : vector<2x128xf32> to vector<2x32xf32>
    %57 = vector.extract_strided_slice %54 {offsets = [0, 96], sizes = [2, 32], strides = [1, 1]} : vector<2x128xf32> to vector<2x32xf32>
    %58 = vector.extract_strided_slice %49 {offsets = [0, 64], sizes = [2, 32], strides = [1, 1]} : vector<2x128xf32> to vector<2x32xf32>
    %59 = math.tanh %58 : vector<2x32xf32>
    %60 = arith.mulf %56, %43 : vector<2x32xf32>
    %61 = arith.mulf %55, %59 : vector<2x32xf32>
    %62 = arith.addf %60, %61 : vector<2x32xf32>
    %63 = math.tanh %62 : vector<2x32xf32>
    %64 = arith.mulf %57, %63 : vector<2x32xf32>
    %c0_18 = arith.constant 0 : index
    %c64 = arith.constant 64 : index
    %65 = vector.load %arg8[%c0_18, %c64] : memref<2x256xf32, #tpu.memory_space<vmem>>, vector<2x32xf32>
    tpu.vector_store %arg8[%c0_18, %c64], %64 {strides = array<i32>} : memref<2x256xf32, #tpu.memory_space<vmem>>, vector<2x32xf32>,
    %66 = vector.extract_strided_slice %5 {offsets = [6, 0], sizes = [2, 128], strides = [1, 1]} : vector<16x128xf32> to vector<2x128xf32>
    %cst_19 = arith.constant dense<0.000000e+00> : vector<2x128xf32>
    %67 = tpu.matmul %64, %6, %cst_19 {dimension_numbers = #tpu.dot_dimension_numbers<[1], [0], [0], [1], [0, 0, 1, 1], [], []>} : vector<2x32xf32>, vector<32x128xf32>, vector<2x128xf32> -> vector<2x128xf32>
    %68 = arith.addf %66, %67 : vector<2x128xf32>
    %69 = arith.negf %68 : vector<2x128xf32>
    %70 = math.exp %69 : vector<2x128xf32>
    %cst_20 = arith.constant 1.000000e+00 : f32
    %71 = vector.broadcast %cst_20 : f32 to vector<2x128xf32>
    %72 = arith.addf %71, %70 : vector<2x128xf32>
    %73 = arith.divf %71, %72 : vector<2x128xf32>
    %74 = vector.extract_strided_slice %73 {offsets = [0, 0], sizes = [2, 32], strides = [1, 1]} : vector<2x128xf32> to vector<2x32xf32>
    %75 = vector.extract_strided_slice %73 {offsets = [0, 32], sizes = [2, 32], strides = [1, 1]} : vector<2x128xf32> to vector<2x32xf32>
    %76 = vector.extract_strided_slice %73 {offsets = [0, 96], sizes = [2, 32], strides = [1, 1]} : vector<2x128xf32> to vector<2x32xf32>
    %77 = vector.extract_strided_slice %68 {offsets = [0, 64], sizes = [2, 32], strides = [1, 1]} : vector<2x128xf32> to vector<2x32xf32>
    %78 = math.tanh %77 : vector<2x32xf32>
    %79 = arith.mulf %75, %62 : vector<2x32xf32>
    %80 = arith.mulf %74, %78 : vector<2x32xf32>
    %81 = arith.addf %79, %80 : vector<2x32xf32>
    %82 = math.tanh %81 : vector<2x32xf32>
    %83 = arith.mulf %76, %82 : vector<2x32xf32>
    %c0_21 = arith.constant 0 : index
    %c96 = arith.constant 96 : index
    %84 = vector.load %arg8[%c0_21, %c96] : memref<2x256xf32, #tpu.memory_space<vmem>>, vector<2x32xf32>
    tpu.vector_store %arg8[%c0_21, %c96], %83 {strides = array<i32>} : memref<2x256xf32, #tpu.memory_space<vmem>>, vector<2x32xf32>,
    %85 = vector.extract_strided_slice %5 {offsets = [8, 0], sizes = [2, 128], strides = [1, 1]} : vector<16x128xf32> to vector<2x128xf32>
    %cst_22 = arith.constant dense<0.000000e+00> : vector<2x128xf32>
    %86 = tpu.matmul %83, %6, %cst_22 {dimension_numbers = #tpu.dot_dimension_numbers<[1], [0], [0], [1], [0, 0, 1, 1], [], []>} : vector<2x32xf32>, vector<32x128xf32>, vector<2x128xf32> -> vector<2x128xf32>
    %87 = arith.addf %85, %86 : vector<2x128xf32>
    %88 = arith.negf %87 : vector<2x128xf32>
    %89 = math.exp %88 : vector<2x128xf32>
    %cst_23 = arith.constant 1.000000e+00 : f32
    %90 = vector.broadcast %cst_23 : f32 to vector<2x128xf32>
    %91 = arith.addf %90, %89 : vector<2x128xf32>
    %92 = arith.divf %90, %91 : vector<2x128xf32>
    %93 = vector.extract_strided_slice %92 {offsets = [0, 0], sizes = [2, 32], strides = [1, 1]} : vector<2x128xf32> to vector<2x32xf32>
    %94 = vector.extract_strided_slice %92 {offsets = [0, 32], sizes = [2, 32], strides = [1, 1]} : vector<2x128xf32> to vector<2x32xf32>
    %95 = vector.extract_strided_slice %92 {offsets = [0, 96], sizes = [2, 32], strides = [1, 1]} : vector<2x128xf32> to vector<2x32xf32>
    %96 = vector.extract_strided_slice %87 {offsets = [0, 64], sizes = [2, 32], strides = [1, 1]} : vector<2x128xf32> to vector<2x32xf32>
    %97 = math.tanh %96 : vector<2x32xf32>
    %98 = arith.mulf %94, %81 : vector<2x32xf32>
    %99 = arith.mulf %93, %97 : vector<2x32xf32>
    %100 = arith.addf %98, %99 : vector<2x32xf32>
    %101 = math.tanh %100 : vector<2x32xf32>
    %102 = arith.mulf %95, %101 : vector<2x32xf32>
    %c0_24 = arith.constant 0 : index
    %c128 = arith.constant 128 : index
    %103 = vector.load %arg8[%c0_24, %c128] : memref<2x256xf32, #tpu.memory_space<vmem>>, vector<2x32xf32>
    tpu.vector_store %arg8[%c0_24, %c128], %102 {strides = array<i32>} : memref<2x256xf32, #tpu.memory_space<vmem>>, vector<2x32xf32>,
    %104 = vector.extract_strided_slice %5 {offsets = [10, 0], sizes = [2, 128], strides = [1, 1]} : vector<16x128xf32> to vector<2x128xf32>
    %cst_25 = arith.constant dense<0.000000e+00> : vector<2x128xf32>
    %105 = tpu.matmul %102, %6, %cst_25 {dimension_numbers = #tpu.dot_dimension_numbers<[1], [0], [0], [1], [0, 0, 1, 1], [], []>} : vector<2x32xf32>, vector<32x128xf32>, vector<2x128xf32> -> vector<2x128xf32>
    %106 = arith.addf %104, %105 : vector<2x128xf32>
    %107 = arith.negf %106 : vector<2x128xf32>
    %108 = math.exp %107 : vector<2x128xf32>
    %cst_26 = arith.constant 1.000000e+00 : f32
    %109 = vector.broadcast %cst_26 : f32 to vector<2x128xf32>
    %110 = arith.addf %109, %108 : vector<2x128xf32>
    %111 = arith.divf %109, %110 : vector<2x128xf32>
    %112 = vector.extract_strided_slice %111 {offsets = [0, 0], sizes = [2, 32], strides = [1, 1]} : vector<2x128xf32> to vector<2x32xf32>
    %113 = vector.extract_strided_slice %111 {offsets = [0, 32], sizes = [2, 32], strides = [1, 1]} : vector<2x128xf32> to vector<2x32xf32>
    %114 = vector.extract_strided_slice %111 {offsets = [0, 96], sizes = [2, 32], strides = [1, 1]} : vector<2x128xf32> to vector<2x32xf32>
    %115 = vector.extract_strided_slice %106 {offsets = [0, 64], sizes = [2, 32], strides = [1, 1]} : vector<2x128xf32> to vector<2x32xf32>
    %116 = math.tanh %115 : vector<2x32xf32>
    %117 = arith.mulf %113, %100 : vector<2x32xf32>
    %118 = arith.mulf %112, %116 : vector<2x32xf32>
    %119 = arith.addf %117, %118 : vector<2x32xf32>
    %120 = math.tanh %119 : vector<2x32xf32>
    %121 = arith.mulf %114, %120 : vector<2x32xf32>
    %c0_27 = arith.constant 0 : index
    %c160 = arith.constant 160 : index
    %122 = vector.load %arg8[%c0_27, %c160] : memref<2x256xf32, #tpu.memory_space<vmem>>, vector<2x32xf32>
    tpu.vector_store %arg8[%c0_27, %c160], %121 {strides = array<i32>} : memref<2x256xf32, #tpu.memory_space<vmem>>, vector<2x32xf32>,
    %123 = vector.extract_strided_slice %5 {offsets = [12, 0], sizes = [2, 128], strides = [1, 1]} : vector<16x128xf32> to vector<2x128xf32>
    %cst_28 = arith.constant dense<0.000000e+00> : vector<2x128xf32>
    %124 = tpu.matmul %121, %6, %cst_28 {dimension_numbers = #tpu.dot_dimension_numbers<[1], [0], [0], [1], [0, 0, 1, 1], [], []>} : vector<2x32xf32>, vector<32x128xf32>, vector<2x128xf32> -> vector<2x128xf32>
    %125 = arith.addf %123, %124 : vector<2x128xf32>
    %126 = arith.negf %125 : vector<2x128xf32>
    %127 = math.exp %126 : vector<2x128xf32>
    %cst_29 = arith.constant 1.000000e+00 : f32
    %128 = vector.broadcast %cst_29 : f32 to vector<2x128xf32>
    %129 = arith.addf %128, %127 : vector<2x128xf32>
    %130 = arith.divf %128, %129 : vector<2x128xf32>
    %131 = vector.extract_strided_slice %130 {offsets = [0, 0], sizes = [2, 32], strides = [1, 1]} : vector<2x128xf32> to vector<2x32xf32>
    %132 = vector.extract_strided_slice %130 {offsets = [0, 32], sizes = [2, 32], strides = [1, 1]} : vector<2x128xf32> to vector<2x32xf32>
    %133 = vector.extract_strided_slice %130 {offsets = [0, 96], sizes = [2, 32], strides = [1, 1]} : vector<2x128xf32> to vector<2x32xf32>
    %134 = vector.extract_strided_slice %125 {offsets = [0, 64], sizes = [2, 32], strides = [1, 1]} : vector<2x128xf32> to vector<2x32xf32>
    %135 = math.tanh %134 : vector<2x32xf32>
    %136 = arith.mulf %132, %119 : vector<2x32xf32>
    %137 = arith.mulf %131, %135 : vector<2x32xf32>
    %138 = arith.addf %136, %137 : vector<2x32xf32>
    %139 = math.tanh %138 : vector<2x32xf32>
    %140 = arith.mulf %133, %139 : vector<2x32xf32>
    %c0_30 = arith.constant 0 : index
    %c192 = arith.constant 192 : index
    %141 = vector.load %arg8[%c0_30, %c192] : memref<2x256xf32, #tpu.memory_space<vmem>>, vector<2x32xf32>
    tpu.vector_store %arg8[%c0_30, %c192], %140 {strides = array<i32>} : memref<2x256xf32, #tpu.memory_space<vmem>>, vector<2x32xf32>,
    %142 = vector.extract_strided_slice %5 {offsets = [14, 0], sizes = [2, 128], strides = [1, 1]} : vector<16x128xf32> to vector<2x128xf32>
    %cst_31 = arith.constant dense<0.000000e+00> : vector<2x128xf32>
    %143 = tpu.matmul %140, %6, %cst_31 {dimension_numbers = #tpu.dot_dimension_numbers<[1], [0], [0], [1], [0, 0, 1, 1], [], []>} : vector<2x32xf32>, vector<32x128xf32>, vector<2x128xf32> -> vector<2x128xf32>
    %144 = arith.addf %142, %143 : vector<2x128xf32>
    %145 = arith.negf %144 : vector<2x128xf32>
    %146 = math.exp %145 : vector<2x128xf32>
    %cst_32 = arith.constant 1.000000e+00 : f32
    %147 = vector.broadcast %cst_32 : f32 to vector<2x128xf32>
    %148 = arith.addf %147, %146 : vector<2x128xf32>
    %149 = arith.divf %147, %148 : vector<2x128xf32>
    %150 = vector.extract_strided_slice %149 {offsets = [0, 0], sizes = [2, 32], strides = [1, 1]} : vector<2x128xf32> to vector<2x32xf32>
    %151 = vector.extract_strided_slice %149 {offsets = [0, 32], sizes = [2, 32], strides = [1, 1]} : vector<2x128xf32> to vector<2x32xf32>
    %152 = vector.extract_strided_slice %149 {offsets = [0, 96], sizes = [2, 32], strides = [1, 1]} : vector<2x128xf32> to vector<2x32xf32>
    %153 = vector.extract_strided_slice %144 {offsets = [0, 64], sizes = [2, 32], strides = [1, 1]} : vector<2x128xf32> to vector<2x32xf32>
    %154 = math.tanh %153 : vector<2x32xf32>
    %155 = arith.mulf %151, %138 : vector<2x32xf32>
    %156 = arith.mulf %150, %154 : vector<2x32xf32>
    %157 = arith.addf %155, %156 : vector<2x32xf32>
    %158 = math.tanh %157 : vector<2x32xf32>
    %159 = arith.mulf %152, %158 : vector<2x32xf32>
    %c0_33 = arith.constant 0 : index
    %c224 = arith.constant 224 : index
    %160 = vector.load %arg8[%c0_33, %c224] : memref<2x256xf32, #tpu.memory_space<vmem>>, vector<2x32xf32>
    tpu.vector_store %arg8[%c0_33, %c224], %159 {strides = array<i32>} : memref<2x256xf32, #tpu.memory_space<vmem>>, vector<2x32xf32>,
    %c0_34 = arith.constant 0 : index
    %c0_35 = arith.constant 0 : index
    %161 = vector.load %arg8[%c0_34, %c0_35] : memref<2x256xf32, #tpu.memory_space<vmem>>, vector<2x256xf32>
    %c0_36 = arith.constant 0 : index
    %c0_37 = arith.constant 0 : index
    %162 = vector.load %arg4[%c0_36, %c0_37] : memref<256x1024xf32, #tpu.memory_space<vmem>>, vector<256x1024xf32>
    %cst_38 = arith.constant dense<0.000000e+00> : vector<2x1024xf32>
    %163 = tpu.matmul %161, %162, %cst_38 {dimension_numbers = #tpu.dot_dimension_numbers<[1], [0], [0], [1], [0, 0, 1, 1], [], []>} : vector<2x256xf32>, vector<256x1024xf32>, vector<2x1024xf32> -> vector<2x1024xf32>
    %c0_39 = arith.constant 0 : index
    %c0_40 = arith.constant 0 : index
    %164 = vector.load %arg5[%c0_39, %c0_40] : memref<1x1024xf32, #tpu.memory_space<vmem>>, vector<1x1024xf32>
    %165 = vector.broadcast %164 : vector<1x1024xf32> to vector<2x1024xf32>
    %166 = arith.addf %163, %165 : vector<2x1024xf32>
    %c0_41 = arith.constant 0 : index
    %c0_42 = arith.constant 0 : index
    %167 = vector.load %arg6[%c0_41, %c0_42] : memref<32x128xf32, #tpu.memory_space<vmem>>, vector<32x128xf32>
    %168 = vector.extract_strided_slice %166 {offsets = [0, 0], sizes = [2, 128], strides = [1, 1]} : vector<2x1024xf32> to vector<2x128xf32>
    %cst_43 = arith.constant dense<0.000000e+00> : vector<2x128xf32>
    %169 = tpu.matmul %159, %167, %cst_43 {dimension_numbers = #tpu.dot_dimension_numbers<[1], [0], [0], [1], [0, 0, 1, 1], [], []>} : vector<2x32xf32>, vector<32x128xf32>, vector<2x128xf32> -> vector<2x128xf32>
    %170 = arith.addf %168, %169 : vector<2x128xf32>
    %171 = arith.negf %170 : vector<2x128xf32>
    %172 = math.exp %171 : vector<2x128xf32>
    %cst_44 = arith.constant 1.000000e+00 : f32
    %173 = vector.broadcast %cst_44 : f32 to vector<2x128xf32>
    %174 = arith.addf %173, %172 : vector<2x128xf32>
    %175 = arith.divf %173, %174 : vector<2x128xf32>
    %176 = vector.extract_strided_slice %175 {offsets = [0, 0], sizes = [2, 32], strides = [1, 1]} : vector<2x128xf32> to vector<2x32xf32>
    %177 = vector.extract_strided_slice %175 {offsets = [0, 32], sizes = [2, 32], strides = [1, 1]} : vector<2x128xf32> to vector<2x32xf32>
    %178 = vector.extract_strided_slice %175 {offsets = [0, 96], sizes = [2, 32], strides = [1, 1]} : vector<2x128xf32> to vector<2x32xf32>
    %179 = vector.extract_strided_slice %170 {offsets = [0, 64], sizes = [2, 32], strides = [1, 1]} : vector<2x128xf32> to vector<2x32xf32>
    %180 = math.tanh %179 : vector<2x32xf32>
    %181 = arith.mulf %177, %157 : vector<2x32xf32>
    %182 = arith.mulf %176, %180 : vector<2x32xf32>
    %183 = arith.addf %181, %182 : vector<2x32xf32>
    %184 = math.tanh %183 : vector<2x32xf32>
    %185 = arith.mulf %178, %184 : vector<2x32xf32>
    %c0_45 = arith.constant 0 : index
    %c0_46 = arith.constant 0 : index
    %186 = vector.load %arg7[%c0_45, %c0_46] : memref<2x256xf32, #tpu.memory_space<vmem>>, vector<2x32xf32>
    tpu.vector_store %arg7[%c0_45, %c0_46], %185 {strides = array<i32>} : memref<2x256xf32, #tpu.memory_space<vmem>>, vector<2x32xf32>,
    %187 = vector.extract_strided_slice %166 {offsets = [0, 128], sizes = [2, 128], strides = [1, 1]} : vector<2x1024xf32> to vector<2x128xf32>
    %cst_47 = arith.constant dense<0.000000e+00> : vector<2x128xf32>
    %188 = tpu.matmul %185, %167, %cst_47 {dimension_numbers = #tpu.dot_dimension_numbers<[1], [0], [0], [1], [0, 0, 1, 1], [], []>} : vector<2x32xf32>, vector<32x128xf32>, vector<2x128xf32> -> vector<2x128xf32>
    %189 = arith.addf %187, %188 : vector<2x128xf32>
    %190 = arith.negf %189 : vector<2x128xf32>
    %191 = math.exp %190 : vector<2x128xf32>
    %cst_48 = arith.constant 1.000000e+00 : f32
    %192 = vector.broadcast %cst_48 : f32 to vector<2x128xf32>
    %193 = arith.addf %192, %191 : vector<2x128xf32>
    %194 = arith.divf %192, %193 : vector<2x128xf32>
    %195 = vector.extract_strided_slice %194 {offsets = [0, 0], sizes = [2, 32], strides = [1, 1]} : vector<2x128xf32> to vector<2x32xf32>
    %196 = vector.extract_strided_slice %194 {offsets = [0, 32], sizes = [2, 32], strides = [1, 1]} : vector<2x128xf32> to vector<2x32xf32>
    %197 = vector.extract_strided_slice %194 {offsets = [0, 96], sizes = [2, 32], strides = [1, 1]} : vector<2x128xf32> to vector<2x32xf32>
    %198 = vector.extract_strided_slice %189 {offsets = [0, 64], sizes = [2, 32], strides = [1, 1]} : vector<2x128xf32> to vector<2x32xf32>
    %199 = math.tanh %198 : vector<2x32xf32>
    %200 = arith.mulf %196, %183 : vector<2x32xf32>
    %201 = arith.mulf %195, %199 : vector<2x32xf32>
    %202 = arith.addf %200, %201 : vector<2x32xf32>
    %203 = math.tanh %202 : vector<2x32xf32>
    %204 = arith.mulf %197, %203 : vector<2x32xf32>
    %c0_49 = arith.constant 0 : index
    %c32_50 = arith.constant 32 : index
    %205 = vector.load %arg7[%c0_49, %c32_50] : memref<2x256xf32, #tpu.memory_space<vmem>>, vector<2x32xf32>
    tpu.vector_store %arg7[%c0_49, %c32_50], %204 {strides = array<i32>} : memref<2x256xf32, #tpu.memory_space<vmem>>, vector<2x32xf32>,
    %206 = vector.extract_strided_slice %166 {offsets = [0, 256], sizes = [2, 128], strides = [1, 1]} : vector<2x1024xf32> to vector<2x128xf32>
    %cst_51 = arith.constant dense<0.000000e+00> : vector<2x128xf32>
    %207 = tpu.matmul %204, %167, %cst_51 {dimension_numbers = #tpu.dot_dimension_numbers<[1], [0], [0], [1], [0, 0, 1, 1], [], []>} : vector<2x32xf32>, vector<32x128xf32>, vector<2x128xf32> -> vector<2x128xf32>
    %208 = arith.addf %206, %207 : vector<2x128xf32>
    %209 = arith.negf %208 : vector<2x128xf32>
    %210 = math.exp %209 : vector<2x128xf32>
    %cst_52 = arith.constant 1.000000e+00 : f32
    %211 = vector.broadcast %cst_52 : f32 to vector<2x128xf32>
    %212 = arith.addf %211, %210 : vector<2x128xf32>
    %213 = arith.divf %211, %212 : vector<2x128xf32>
    %214 = vector.extract_strided_slice %213 {offsets = [0, 0], sizes = [2, 32], strides = [1, 1]} : vector<2x128xf32> to vector<2x32xf32>
    %215 = vector.extract_strided_slice %213 {offsets = [0, 32], sizes = [2, 32], strides = [1, 1]} : vector<2x128xf32> to vector<2x32xf32>
    %216 = vector.extract_strided_slice %213 {offsets = [0, 96], sizes = [2, 32], strides = [1, 1]} : vector<2x128xf32> to vector<2x32xf32>
    %217 = vector.extract_strided_slice %208 {offsets = [0, 64], sizes = [2, 32], strides = [1, 1]} : vector<2x128xf32> to vector<2x32xf32>
    %218 = math.tanh %217 : vector<2x32xf32>
    %219 = arith.mulf %215, %202 : vector<2x32xf32>
    %220 = arith.mulf %214, %218 : vector<2x32xf32>
    %221 = arith.addf %219, %220 : vector<2x32xf32>
    %222 = math.tanh %221 : vector<2x32xf32>
    %223 = arith.mulf %216, %222 : vector<2x32xf32>
    %c0_53 = arith.constant 0 : index
    %c64_54 = arith.constant 64 : index
    %224 = vector.load %arg7[%c0_53, %c64_54] : memref<2x256xf32, #tpu.memory_space<vmem>>, vector<2x32xf32>
    tpu.vector_store %arg7[%c0_53, %c64_54], %223 {strides = array<i32>} : memref<2x256xf32, #tpu.memory_space<vmem>>, vector<2x32xf32>,
    %225 = vector.extract_strided_slice %166 {offsets = [0, 384], sizes = [2, 128], strides = [1, 1]} : vector<2x1024xf32> to vector<2x128xf32>
    %cst_55 = arith.constant dense<0.000000e+00> : vector<2x128xf32>
    %226 = tpu.matmul %223, %167, %cst_55 {dimension_numbers = #tpu.dot_dimension_numbers<[1], [0], [0], [1], [0, 0, 1, 1], [], []>} : vector<2x32xf32>, vector<32x128xf32>, vector<2x128xf32> -> vector<2x128xf32>
    %227 = arith.addf %225, %226 : vector<2x128xf32>
    %228 = arith.negf %227 : vector<2x128xf32>
    %229 = math.exp %228 : vector<2x128xf32>
    %cst_56 = arith.constant 1.000000e+00 : f32
    %230 = vector.broadcast %cst_56 : f32 to vector<2x128xf32>
    %231 = arith.addf %230, %229 : vector<2x128xf32>
    %232 = arith.divf %230, %231 : vector<2x128xf32>
    %233 = vector.extract_strided_slice %232 {offsets = [0, 0], sizes = [2, 32], strides = [1, 1]} : vector<2x128xf32> to vector<2x32xf32>
    %234 = vector.extract_strided_slice %232 {offsets = [0, 32], sizes = [2, 32], strides = [1, 1]} : vector<2x128xf32> to vector<2x32xf32>
    %235 = vector.extract_strided_slice %232 {offsets = [0, 96], sizes = [2, 32], strides = [1, 1]} : vector<2x128xf32> to vector<2x32xf32>
    %236 = vector.extract_strided_slice %227 {offsets = [0, 64], sizes = [2, 32], strides = [1, 1]} : vector<2x128xf32> to vector<2x32xf32>
    %237 = math.tanh %236 : vector<2x32xf32>
    %238 = arith.mulf %234, %221 : vector<2x32xf32>
    %239 = arith.mulf %233, %237 : vector<2x32xf32>
    %240 = arith.addf %238, %239 : vector<2x32xf32>
    %241 = math.tanh %240 : vector<2x32xf32>
    %242 = arith.mulf %235, %241 : vector<2x32xf32>
    %c0_57 = arith.constant 0 : index
    %c96_58 = arith.constant 96 : index
    %243 = vector.load %arg7[%c0_57, %c96_58] : memref<2x256xf32, #tpu.memory_space<vmem>>, vector<2x32xf32>
    tpu.vector_store %arg7[%c0_57, %c96_58], %242 {strides = array<i32>} : memref<2x256xf32, #tpu.memory_space<vmem>>, vector<2x32xf32>,
    %244 = vector.extract_strided_slice %166 {offsets = [0, 512], sizes = [2, 128], strides = [1, 1]} : vector<2x1024xf32> to vector<2x128xf32>
    %cst_59 = arith.constant dense<0.000000e+00> : vector<2x128xf32>
    %245 = tpu.matmul %242, %167, %cst_59 {dimension_numbers = #tpu.dot_dimension_numbers<[1], [0], [0], [1], [0, 0, 1, 1], [], []>} : vector<2x32xf32>, vector<32x128xf32>, vector<2x128xf32> -> vector<2x128xf32>
    %246 = arith.addf %244, %245 : vector<2x128xf32>
    %247 = arith.negf %246 : vector<2x128xf32>
    %248 = math.exp %247 : vector<2x128xf32>
    %cst_60 = arith.constant 1.000000e+00 : f32
    %249 = vector.broadcast %cst_60 : f32 to vector<2x128xf32>
    %250 = arith.addf %249, %248 : vector<2x128xf32>
    %251 = arith.divf %249, %250 : vector<2x128xf32>
    %252 = vector.extract_strided_slice %251 {offsets = [0, 0], sizes = [2, 32], strides = [1, 1]} : vector<2x128xf32> to vector<2x32xf32>
    %253 = vector.extract_strided_slice %251 {offsets = [0, 32], sizes = [2, 32], strides = [1, 1]} : vector<2x128xf32> to vector<2x32xf32>
    %254 = vector.extract_strided_slice %251 {offsets = [0, 96], sizes = [2, 32], strides = [1, 1]} : vector<2x128xf32> to vector<2x32xf32>
    %255 = vector.extract_strided_slice %246 {offsets = [0, 64], sizes = [2, 32], strides = [1, 1]} : vector<2x128xf32> to vector<2x32xf32>
    %256 = math.tanh %255 : vector<2x32xf32>
    %257 = arith.mulf %253, %240 : vector<2x32xf32>
    %258 = arith.mulf %252, %256 : vector<2x32xf32>
    %259 = arith.addf %257, %258 : vector<2x32xf32>
    %260 = math.tanh %259 : vector<2x32xf32>
    %261 = arith.mulf %254, %260 : vector<2x32xf32>
    %c0_61 = arith.constant 0 : index
    %c128_62 = arith.constant 128 : index
    %262 = vector.load %arg7[%c0_61, %c128_62] : memref<2x256xf32, #tpu.memory_space<vmem>>, vector<2x32xf32>
    tpu.vector_store %arg7[%c0_61, %c128_62], %261 {strides = array<i32>} : memref<2x256xf32, #tpu.memory_space<vmem>>, vector<2x32xf32>,
    %263 = vector.extract_strided_slice %166 {offsets = [0, 640], sizes = [2, 128], strides = [1, 1]} : vector<2x1024xf32> to vector<2x128xf32>
    %cst_63 = arith.constant dense<0.000000e+00> : vector<2x128xf32>
    %264 = tpu.matmul %261, %167, %cst_63 {dimension_numbers = #tpu.dot_dimension_numbers<[1], [0], [0], [1], [0, 0, 1, 1], [], []>} : vector<2x32xf32>, vector<32x128xf32>, vector<2x128xf32> -> vector<2x128xf32>
    %265 = arith.addf %263, %264 : vector<2x128xf32>
    %266 = arith.negf %265 : vector<2x128xf32>
    %267 = math.exp %266 : vector<2x128xf32>
    %cst_64 = arith.constant 1.000000e+00 : f32
    %268 = vector.broadcast %cst_64 : f32 to vector<2x128xf32>
    %269 = arith.addf %268, %267 : vector<2x128xf32>
    %270 = arith.divf %268, %269 : vector<2x128xf32>
    %271 = vector.extract_strided_slice %270 {offsets = [0, 0], sizes = [2, 32], strides = [1, 1]} : vector<2x128xf32> to vector<2x32xf32>
    %272 = vector.extract_strided_slice %270 {offsets = [0, 32], sizes = [2, 32], strides = [1, 1]} : vector<2x128xf32> to vector<2x32xf32>
    %273 = vector.extract_strided_slice %270 {offsets = [0, 96], sizes = [2, 32], strides = [1, 1]} : vector<2x128xf32> to vector<2x32xf32>
    %274 = vector.extract_strided_slice %265 {offsets = [0, 64], sizes = [2, 32], strides = [1, 1]} : vector<2x128xf32> to vector<2x32xf32>
    %275 = math.tanh %274 : vector<2x32xf32>
    %276 = arith.mulf %272, %259 : vector<2x32xf32>
    %277 = arith.mulf %271, %275 : vector<2x32xf32>
    %278 = arith.addf %276, %277 : vector<2x32xf32>
    %279 = math.tanh %278 : vector<2x32xf32>
    %280 = arith.mulf %273, %279 : vector<2x32xf32>
    %c0_65 = arith.constant 0 : index
    %c160_66 = arith.constant 160 : index
    %281 = vector.load %arg7[%c0_65, %c160_66] : memref<2x256xf32, #tpu.memory_space<vmem>>, vector<2x32xf32>
    tpu.vector_store %arg7[%c0_65, %c160_66], %280 {strides = array<i32>} : memref<2x256xf32, #tpu.memory_space<vmem>>, vector<2x32xf32>,
    %282 = vector.extract_strided_slice %166 {offsets = [0, 768], sizes = [2, 128], strides = [1, 1]} : vector<2x1024xf32> to vector<2x128xf32>
    %cst_67 = arith.constant dense<0.000000e+00> : vector<2x128xf32>
    %283 = tpu.matmul %280, %167, %cst_67 {dimension_numbers = #tpu.dot_dimension_numbers<[1], [0], [0], [1], [0, 0, 1, 1], [], []>} : vector<2x32xf32>, vector<32x128xf32>, vector<2x128xf32> -> vector<2x128xf32>
    %284 = arith.addf %282, %283 : vector<2x128xf32>
    %285 = arith.negf %284 : vector<2x128xf32>
    %286 = math.exp %285 : vector<2x128xf32>
    %cst_68 = arith.constant 1.000000e+00 : f32
    %287 = vector.broadcast %cst_68 : f32 to vector<2x128xf32>
    %288 = arith.addf %287, %286 : vector<2x128xf32>
    %289 = arith.divf %287, %288 : vector<2x128xf32>
    %290 = vector.extract_strided_slice %289 {offsets = [0, 0], sizes = [2, 32], strides = [1, 1]} : vector<2x128xf32> to vector<2x32xf32>
    %291 = vector.extract_strided_slice %289 {offsets = [0, 32], sizes = [2, 32], strides = [1, 1]} : vector<2x128xf32> to vector<2x32xf32>
    %292 = vector.extract_strided_slice %289 {offsets = [0, 96], sizes = [2, 32], strides = [1, 1]} : vector<2x128xf32> to vector<2x32xf32>
    %293 = vector.extract_strided_slice %284 {offsets = [0, 64], sizes = [2, 32], strides = [1, 1]} : vector<2x128xf32> to vector<2x32xf32>
    %294 = math.tanh %293 : vector<2x32xf32>
    %295 = arith.mulf %291, %278 : vector<2x32xf32>
    %296 = arith.mulf %290, %294 : vector<2x32xf32>
    %297 = arith.addf %295, %296 : vector<2x32xf32>
    %298 = math.tanh %297 : vector<2x32xf32>
    %299 = arith.mulf %292, %298 : vector<2x32xf32>
    %c0_69 = arith.constant 0 : index
    %c192_70 = arith.constant 192 : index
    %300 = vector.load %arg7[%c0_69, %c192_70] : memref<2x256xf32, #tpu.memory_space<vmem>>, vector<2x32xf32>
    tpu.vector_store %arg7[%c0_69, %c192_70], %299 {strides = array<i32>} : memref<2x256xf32, #tpu.memory_space<vmem>>, vector<2x32xf32>,
    %301 = vector.extract_strided_slice %166 {offsets = [0, 896], sizes = [2, 128], strides = [1, 1]} : vector<2x1024xf32> to vector<2x128xf32>
    %cst_71 = arith.constant dense<0.000000e+00> : vector<2x128xf32>
    %302 = tpu.matmul %299, %167, %cst_71 {dimension_numbers = #tpu.dot_dimension_numbers<[1], [0], [0], [1], [0, 0, 1, 1], [], []>} : vector<2x32xf32>, vector<32x128xf32>, vector<2x128xf32> -> vector<2x128xf32>
    %303 = arith.addf %301, %302 : vector<2x128xf32>
    %304 = arith.negf %303 : vector<2x128xf32>
    %305 = math.exp %304 : vector<2x128xf32>
    %cst_72 = arith.constant 1.000000e+00 : f32
    %306 = vector.broadcast %cst_72 : f32 to vector<2x128xf32>
    %307 = arith.addf %306, %305 : vector<2x128xf32>
    %308 = arith.divf %306, %307 : vector<2x128xf32>
    %309 = vector.extract_strided_slice %308 {offsets = [0, 0], sizes = [2, 32], strides = [1, 1]} : vector<2x128xf32> to vector<2x32xf32>
    %310 = vector.extract_strided_slice %308 {offsets = [0, 32], sizes = [2, 32], strides = [1, 1]} : vector<2x128xf32> to vector<2x32xf32>
    %311 = vector.extract_strided_slice %308 {offsets = [0, 96], sizes = [2, 32], strides = [1, 1]} : vector<2x128xf32> to vector<2x32xf32>
    %312 = vector.extract_strided_slice %303 {offsets = [0, 64], sizes = [2, 32], strides = [1, 1]} : vector<2x128xf32> to vector<2x32xf32>
    %313 = math.tanh %312 : vector<2x32xf32>
    %314 = arith.mulf %310, %297 : vector<2x32xf32>
    %315 = arith.mulf %309, %313 : vector<2x32xf32>
    %316 = arith.addf %314, %315 : vector<2x32xf32>
    %317 = math.tanh %316 : vector<2x32xf32>
    %318 = arith.mulf %311, %317 : vector<2x32xf32>
    %c0_73 = arith.constant 0 : index
    %c224_74 = arith.constant 224 : index
    %319 = vector.load %arg7[%c0_73, %c224_74] : memref<2x256xf32, #tpu.memory_space<vmem>>, vector<2x32xf32>
    tpu.vector_store %arg7[%c0_73, %c224_74], %318 {strides = array<i32>} : memref<2x256xf32, #tpu.memory_space<vmem>>, vector<2x32xf32>,
    return
  }
}

</mosaic_0001>

<llo_original>
// kernel: tpu_custom_call.1
$region0: #{tpu_custom_call.1}
  #allocation0 [shape = 'u32[]', space=smem, size = 0x4, offset = 0x4, fixed_abs, tag = 'smem constant byte address 0x4 - core index']
  #allocation1 [shape = 'u32[72,128]{1,0:T(1,128)}', space=vmem, size = 0x9000, scoped, tag = 'internal scratch']
  #allocation2 [shape = 'f32[2,256]{1,0:T(2,128)}', space=vmem, size = 0x800, scoped, tag = 'scratch operand']
  %s0 = inlined_call_operand.hbm [shape: f32[16,32], index: 0, kind: input, shape index: {}]
  %s1 = inlined_call_operand.hbm [shape: f32[32,128], index: 1, kind: input, shape index: {}]
  %s2 = inlined_call_operand.hbm [shape: f32[32,128], index: 2, kind: input, shape index: {}]
  %s3 = inlined_call_operand.vmem [shape: f32[1,128], index: 3, kind: input, shape index: {}]
  %s4 = inlined_call_operand.hbm [shape: f32[256,1024], index: 4, kind: input, shape index: {}]
  %s5 = inlined_call_operand.hbm [shape: f32[1,1024], index: 5, kind: input, shape index: {}]
  %s6 = inlined_call_operand.hbm [shape: f32[32,128], index: 6, kind: input, shape index: {}]
  %s7 = inlined_call_operand.hbm [shape: f32[2,256], index: 7, kind: output, shape index: {}]
  %s8 = sld [smem:[#allocation0]]
  $region62: #{tpu_custom_call.1} parent=0
    _
  %s10 = ssub.s32 1, %s8
  %s11 = scalar_select 0, %s10, %s8
  $region1: #{tpu_custom_call.1} parent=0
    #allocation3 [shape = 'u8[8192]{0}', space=vmem, size = 0x2000, scoped, tag = 'input window, operand 0, single buffered']
    #allocation4 [shape = 's32[1]{0}', space=sflag, size = 0x4, scoped, tag = 'scoped memory for tpu_custom_call.1']
    #allocation5 [shape = 's32[1]{0}', space=sflag, size = 0x4, scoped, tag = 'scoped memory for tpu_custom_call.1']
    #allocation6 [shape = 'u8[16384]{0}', space=vmem, size = 0x4000, scoped, tag = 'input window, operand 1, single buffered']
    #allocation7 [shape = 's32[1]{0}', space=sflag, size = 0x4, scoped, tag = 'scoped memory for tpu_custom_call.1']
    #allocation8 [shape = 'u8[16384]{0}', space=vmem, size = 0x4000, scoped, tag = 'input window, operand 2, single buffered']
    #allocation9 [shape = 'u8[1048576]{0}', space=vmem, size = 0x100000, scoped, tag = 'input window, operand 4, single buffered']
    #allocation10 [shape = 's32[1]{0}', space=sflag, size = 0x4, scoped, tag = 'scoped memory for tpu_custom_call.1']
    #allocation11 [shape = 'u8[4096]{0}', space=vmem, size = 0x1000, scoped, tag = 'input window, operand 5, single buffered']
    #allocation12 [shape = 'u8[16384]{0}', space=vmem, size = 0x4000, scoped, tag = 'input window, operand 6, single buffered']
    #allocation13 [shape = 's32[1]{0}', space=sflag, size = 0x4, scoped, tag = 'scoped memory for tpu_custom_call.1']
    #allocation14 [shape = 'u8[2048]{0}', space=vmem, size = 0x800, scoped, tag = 'output window, operand 0, single buffered']
    %12 = vsyncpa [#allocation4], 0
    %13 = vsyncpa [#allocation7], 0
    %14 = vsyncpa [#allocation10], 0
    %15 = vsyncpa [#allocation13], 0
    %16 = vsyncpa [#allocation5], 0
    // Predicated region
    $region2: #{tpu_custom_call.1} parent=1 // pred_check
      _
    $region3: #{tpu_custom_call.1} parent=1 // pred_check_branch
      %18 = sbr.rel (0) target = $region5
    $region4: #{tpu_custom_call.1} parent=1 // pred_region
      %20 = vsyncadd [#allocation4], 0
      %s21 = sshll.u32 %s0, 4
      %s22 = int_to_ptr.hbm [resolvable:$true] %s21
      %s23 = sshll.u32 [#allocation3], 4
      %s24 = int_to_ptr.vmem [resolvable:$true] %s23
      %29 = dma.hbm_to_vmem [thread:$0]  %s22, 256, %s24, [#allocation4], 128, 128, 8
    $region5: #{tpu_custom_call.1} parent=1 // pred_fallthru
      _
    // Predicated region
    $region6: #{tpu_custom_call.1} parent=1 // pred_check
      _
    $region7: #{tpu_custom_call.1} parent=1 // pred_check_branch
      %31 = sbr.rel (0) target = $region9
    $region8: #{tpu_custom_call.1} parent=1 // pred_region
      %33 = vsyncadd [#allocation7], 0
      %s34 = sshll.u32 %s1, 4
      %s35 = int_to_ptr.hbm [resolvable:$true] %s34
      %s36 = sshll.u32 [#allocation6], 4
      %s37 = int_to_ptr.vmem [resolvable:$true] %s36
      %42 = dma.hbm_to_vmem [thread:$0]  %s35, 512, %s37, [#allocation7], 128, 128, 8
    $region9: #{tpu_custom_call.1} parent=1 // pred_fallthru
      _
    // Predicated region
    $region10: #{tpu_custom_call.1} parent=1 // pred_check
      _
    $region11: #{tpu_custom_call.1} parent=1 // pred_check_branch
      %44 = sbr.rel (0) target = $region13
    $region12: #{tpu_custom_call.1} parent=1 // pred_region
      %46 = vsyncadd [#allocation7], 0
      %s47 = sshll.u32 %s2, 4
      %s48 = int_to_ptr.hbm [resolvable:$true] %s47
      %s49 = sshll.u32 [#allocation8], 4
      %s50 = int_to_ptr.vmem [resolvable:$true] %s49
      %55 = dma.hbm_to_vmem [thread:$0]  %s48, 512, %s50, [#allocation7], 128, 128, 8
    $region13: #{tpu_custom_call.1} parent=1 // pred_fallthru
      _
    // Predicated region
    $region14: #{tpu_custom_call.1} parent=1 // pred_check
      _
    $region15: #{tpu_custom_call.1} parent=1 // pred_check_branch
      %57 = sbr.rel (0) target = $region17
    $region16: #{tpu_custom_call.1} parent=1 // pred_region
      _
    $region17: #{tpu_custom_call.1} parent=1 // pred_fallthru
      _
    // Predicated region
    $region18: #{tpu_custom_call.1} parent=1 // pred_check
      _
    $region19: #{tpu_custom_call.1} parent=1 // pred_check_branch
      %59 = sbr.rel (0) target = $region21
    $region20: #{tpu_custom_call.1} parent=1 // pred_region
      %61 = vsyncadd [#allocation10], 0
      %s62 = sshll.u32 %s4, 4
      %s63 = int_to_ptr.hbm [resolvable:$true] %s62
      %s64 = sshll.u32 [#allocation9], 4
      %s65 = int_to_ptr.vmem [resolvable:$true] %s64
      %70 = dma.hbm_to_vmem [thread:$0]  %s63, 32768, %s65, [#allocation10], 1024, 1024, 64
    $region21: #{tpu_custom_call.1} parent=1 // pred_fallthru
      _
    // Predicated region
    $region22: #{tpu_custom_call.1} parent=1 // pred_check
      _
    $region23: #{tpu_custom_call.1} parent=1 // pred_check_branch
      %72 = sbr.rel (0) target = $region25
    $region24: #{tpu_custom_call.1} parent=1 // pred_region
      %74 = vsyncadd [#allocation10], 0
      %s76 = sshll.u32 %s5, 4
      %s77 = int_to_ptr.hbm [resolvable:$true] %s76
      %s78 = sshll.u32 [#allocation11], 4
      %s79 = int_to_ptr.vmem [resolvable:$true] %s78
      %81 = dma.hbm_to_vmem [thread:$0]  %s77, 128, %s79, [#allocation10]
    $region25: #{tpu_custom_call.1} parent=1 // pred_fallthru
      _
    // Predicated region
    $region26: #{tpu_custom_call.1} parent=1 // pred_check
      _
    $region27: #{tpu_custom_call.1} parent=1 // pred_check_branch
      %83 = sbr.rel (0) target = $region29
    $region28: #{tpu_custom_call.1} parent=1 // pred_region
      %85 = vsyncadd [#allocation13], 0
      %s86 = sshll.u32 %s6, 4
      %s87 = int_to_ptr.hbm [resolvable:$true] %s86
      %s88 = sshll.u32 [#allocation12], 4
      %s89 = int_to_ptr.vmem [resolvable:$true] %s88
      %94 = dma.hbm_to_vmem [thread:$0]  %s87, 512, %s89, [#allocation13], 128, 128, 8
    $region29: #{tpu_custom_call.1} parent=1 // pred_fallthru
      _
    // Predicated region
    $region30: #{tpu_custom_call.1} parent=1 // pred_check
      _
    $region31: #{tpu_custom_call.1} parent=1 // pred_check_branch
      %96 = sbr.rel (0) target = $region33
    $region32: #{tpu_custom_call.1} parent=1 // pred_region
      %98 = dma.done [#allocation4], 256
    $region33: #{tpu_custom_call.1} parent=1 // pred_fallthru
      _
    // Predicated region
    $region34: #{tpu_custom_call.1} parent=1 // pred_check
      _
    $region35: #{tpu_custom_call.1} parent=1 // pred_check_branch
      %100 = sbr.rel (0) target = $region37
    $region36: #{tpu_custom_call.1} parent=1 // pred_region
      %102 = dma.done [#allocation7], 512
    $region37: #{tpu_custom_call.1} parent=1 // pred_fallthru
      _
    // Predicated region
    $region38: #{tpu_custom_call.1} parent=1 // pred_check
      _
    $region39: #{tpu_custom_call.1} parent=1 // pred_check_branch
      %104 = sbr.rel (0) target = $region41
    $region40: #{tpu_custom_call.1} parent=1 // pred_region
      %106 = dma.done [#allocation7], 512
    $region41: #{tpu_custom_call.1} parent=1 // pred_fallthru
      _
    // Predicated region
    $region42: #{tpu_custom_call.1} parent=1 // pred_check
      _
    $region43: #{tpu_custom_call.1} parent=1 // pred_check_branch
      %108 = sbr.rel (0) target = $region45
    $region44: #{tpu_custom_call.1} parent=1 // pred_region
      %110 = dma.done [#allocation10], 32768
    $region45: #{tpu_custom_call.1} parent=1 // pred_fallthru
      _
    // Predicated region
    $region46: #{tpu_custom_call.1} parent=1 // pred_check
      _
    $region47: #{tpu_custom_call.1} parent=1 // pred_check_branch
      %112 = sbr.rel (0) target = $region49
    $region48: #{tpu_custom_call.1} parent=1 // pred_region
      %114 = dma.done [#allocation10], 128
    $region49: #{tpu_custom_call.1} parent=1 // pred_fallthru
      _
    // Predicated region
    $region50: #{tpu_custom_call.1} parent=1 // pred_check
      _
    $region51: #{tpu_custom_call.1} parent=1 // pred_check_branch
      %116 = sbr.rel (0) target = $region53
    $region52: #{tpu_custom_call.1} parent=1 // pred_region
      %118 = dma.done [#allocation13], 512
    $region53: #{tpu_custom_call.1} parent=1 // pred_fallthru
      _
    %v119 = vld [vmem:[#allocation3] sm:$0xff]
    %v120 = vld [vmem:[#allocation3 + $0x8] sm:$0xff]
    %v121 = vld [vmem:[#allocation6] sm:$0xff]
    %v122 = vld [vmem:[#allocation6 + $0x8] sm:$0xff]
    %v123 = vld [vmem:[#allocation6 + $0x10] sm:$0xff]
    %v124 = vld [vmem:[#allocation6 + $0x18] sm:$0xff]
    %v125 = vld [vmem:[%s3] sm:$0x1]
    %v127 = vperm.slane %v125, 0
    %vm129 = vcmask 261120
    %v131 = vsel %vm129, %v119, 0
    %v134 = vsel %vm129, %v120, 0
    %136 = vmatpush.msra.mxu0 0.0
    %137 = vmatpush.msra.mxu0 0.0
    %138 = vmatpush.msra.mxu0 0.0
    %139 = vmatpush.msra.mxu0 0.0
    %140 = vmatpush.msra.mxu0 0.0
    %141 = vmatpush.msra.mxu0 0.0
    %142 = vmatpush.msra.mxu0 0.0
    %143 = vmatpush.msra.mxu0 0.0
    %144 = vmatpush.msra.mxu0 0.0
    %145 = vmatpush.msra.mxu0 0.0
    %146 = vmatpush.msra.mxu0 0.0
    %147 = vmatpush.msra.mxu0 0.0
    %148 = vmatpush.msra.mxu0 %v124
    %149 = vmatpush.msra.mxu0 %v123
    %150 = vmatpush.msra.mxu0 %v122
    %151 = vmatpush.msra.mxu0 %v121
    %152 = vmatmul.f32.gmra.mxu0 %v131
    %v153 = vpop.f32.mrf.mxu0
    %v154 = vadd.f32 %v127, %v153
    %155 = vmatmul.f32.gmra.mxu0 %v134
    %v156 = vpop.f32.mrf.mxu0
    %v157 = vadd.f32 %v127, %v156
    %158 = vdwg.mxu0
    %v159 = vld [vmem:[#allocation8] sm:$0xff]
    %v160 = vld [vmem:[#allocation8 + $0x8] sm:$0xff]
    %v161 = vld [vmem:[#allocation8 + $0x10] sm:$0xff]
    %v162 = vld [vmem:[#allocation8 + $0x18] sm:$0xff]
    %v164 = vsel %vm129, 0.0, 0
    %166 = vmatpush.msra.mxu0 0.0
    %167 = vmatpush.msra.mxu0 0.0
    %168 = vmatpush.msra.mxu0 0.0
    %169 = vmatpush.msra.mxu0 0.0
    %170 = vmatpush.msra.mxu0 0.0
    %171 = vmatpush.msra.mxu0 0.0
    %172 = vmatpush.msra.mxu0 0.0
    %173 = vmatpush.msra.mxu0 0.0
    %174 = vmatpush.msra.mxu0 0.0
    %175 = vmatpush.msra.mxu0 0.0
    %176 = vmatpush.msra.mxu0 0.0
    %177 = vmatpush.msra.mxu0 0.0
    %178 = vmatpush.msra.mxu0 %v162
    %179 = vmatpush.msra.mxu0 %v161
    %180 = vmatpush.msra.mxu0 %v160
    %181 = vmatpush.msra.mxu0 %v159
    %182 = vmatmul.f32.gmra.mxu0 %v164
    %v183 = vpop.f32.mrf.mxu0
    %v184 = vadd.f32 0.0, %v183
    %185 = vdwg.mxu0
    %v186 = vadd.f32 %v154, %v184
    %v187 = vxor.u32 %v186, 2147483648
    %v188 = vmul.f32 %v187, 1.442695
    %v189 = vpow.pop %v188
    %v190 = vadd.f32 %v189, 1.0
    %v191 = vrcp.pop %v190
    %v192 = vmul.f32 %v190, %v191
    %v193 = vsub.f32 1.0, %v192
    %v194 = vmul.f32 %v191, %v193
    %v195 = vadd.f32 %v191, %v194
    %vm196 = vweird.f32 %v190
    %vm197 = vweird.f32 %v191
    %vm198 = vmor %vm196, %vm197
    %v199 = vsel %vm198, %v191, %v195
    %v200 = vand.u32 2147483647, %v190
    %vm201 = vcmp.eq.f32.partialorder %v200, 8.507059e+37
    %v202 = vand.u32 %v190, 2147483648
    %v203 = vor.u32 1.1754944e-38, %v202
    %v204 = vsel %vm201, %v203, %v199
    %v205 = vmul.f32 1.0, %v204
    %v206 = vtanh.pop %v186
    %v207 = vmul.f32 %v205, 0.0
    %209 = vrot.lane.b32.xlu0 %v206, 64
    %v210 = vpop.permute.xlu0 %209
    %v212 = vmul.f32 %v205, %v210
    %214 = vrot.lane.b32.xlu0 %v212, 32
    %v215 = vpop.permute.xlu0 %214
    %v217 = vadd.f32 %v207, %v215
    %v218 = vtanh.pop %v217
    %220 = vrot.lane.b32.xlu0 %v218, 64
    %v221 = vpop.permute.xlu0 %220
    %v223 = vmul.f32 %v205, %v221
    %225 = vrot.lane.b32.xlu0 %v223, 32
    %v226 = vpop.permute.xlu0 %225
    %vm228 = vcmask 254976
    %229 = vst.msk [vmem:[#allocation2] sm:$0x3] %vm228, %v226
    %v230 = vsel %vm129, %v226, 0
    %232 = vmatpush.msra.mxu0 0.0
    %233 = vmatpush.msra.mxu0 0.0
    %234 = vmatpush.msra.mxu0 0.0
    %235 = vmatpush.msra.mxu0 0.0
    %236 = vmatpush.msra.mxu0 0.0
    %237 = vmatpush.msra.mxu0 0.0
    %238 = vmatpush.msra.mxu0 0.0
    %239 = vmatpush.msra.mxu0 0.0
    %240 = vmatpush.msra.mxu0 0.0
    %241 = vmatpush.msra.mxu0 0.0
    %242 = vmatpush.msra.mxu0 0.0
    %243 = vmatpush.msra.mxu0 0.0
    %244 = vmatpush.msra.mxu0 %v162
    %245 = vmatpush.msra.mxu0 %v161
    %246 = vmatpush.msra.mxu0 %v160
    %247 = vmatpush.msra.mxu0 %v159
    %248 = vmatmul.f32.gmra.mxu0 %v230
    %v249 = vpop.f32.mrf.mxu0
    %v250 = vadd.f32 0.0, %v249
    %251 = vdwg.mxu0
    %v253 = vrot.slane %v250, 6
    %v255 = vadd.f32 %v154, %v253
    %v256 = vxor.u32 %v255, 2147483648
    %v257 = vmul.f32 %v256, 1.442695
    %v258 = vpow.pop %v257
    %v259 = vadd.f32 %v258, 1.0
    %v260 = vrcp.pop %v259
    %v261 = vmul.f32 %v259, %v260
    %v262 = vsub.f32 1.0, %v261
    %v263 = vmul.f32 %v260, %v262
    %v264 = vadd.f32 %v260, %v263
    %vm265 = vweird.f32 %v259
    %vm266 = vweird.f32 %v260
    %vm267 = vmor %vm265, %vm266
    %v268 = vsel %vm267, %v260, %v264
    %v269 = vand.u32 2147483647, %v259
    %vm270 = vcmp.eq.f32.partialorder %v269, 8.507059e+37
    %v271 = vand.u32 %v259, 2147483648
    %v272 = vor.u32 1.1754944e-38, %v271
    %v273 = vsel %vm270, %v272, %v268
    %v274 = vmul.f32 1.0, %v273
    %v275 = vtanh.pop %v255
    %v277 = vrot.slane %v217, 6
    %v279 = vmul.f32 %v274, %v277
    %281 = vrot.lane.b32.xlu0 %v275, 64
    %v282 = vpop.permute.xlu0 %281
    %v284 = vmul.f32 %v274, %v282
    %286 = vrot.lane.b32.xlu0 %v284, 32
    %v287 = vpop.permute.xlu0 %286
    %v289 = vadd.f32 %v279, %v287
    %v290 = vtanh.pop %v289
    %292 = vrot.lane.b32.xlu0 %v290, 64
    %v293 = vpop.permute.xlu0 %292
    %v295 = vmul.f32 %v274, %v293
    %297 = vst.sshfl [vmem:[#allocation1] sm:$0xff pattern:$0x73625140] %v295
    %s298 = scalar_lea.vmem [#allocation1], 1
    %v299 = vld [vmem:[%s298] ss:$4 sm:$0xff]
    %300 = vrot.lane.b32.xlu0 %v299, 64
    %v301 = vpop.permute.xlu0 %300
    %vm303 = vcmask 517376
    %304 = vst.msk [vmem:[#allocation2] sm:$0x3] %vm303, %v301
    %v305 = vrot.slane %v295, 2
    %306 = vrot.lane.b32.xlu0 %v305, 32
    %v307 = vpop.permute.xlu0 %306
    %v308 = vsel %vm129, %v307, 0
    %310 = vmatpush.msra.mxu0 0.0
    %311 = vmatpush.msra.mxu0 0.0
    %312 = vmatpush.msra.mxu0 0.0
    %313 = vmatpush.msra.mxu0 0.0
    %314 = vmatpush.msra.mxu0 0.0
    %315 = vmatpush.msra.mxu0 0.0
    %316 = vmatpush.msra.mxu0 0.0
    %317 = vmatpush.msra.mxu0 0.0
    %318 = vmatpush.msra.mxu0 0.0
    %319 = vmatpush.msra.mxu0 0.0
    %320 = vmatpush.msra.mxu0 0.0
    %321 = vmatpush.msra.mxu0 0.0
    %322 = vmatpush.msra.mxu0 %v162
    %323 = vmatpush.msra.mxu0 %v161
    %324 = vmatpush.msra.mxu0 %v160
    %325 = vmatpush.msra.mxu0 %v159
    %326 = vmatmul.f32.gmra.mxu0 %v308
    %v327 = vpop.f32.mrf.mxu0
    %v328 = vadd.f32 0.0, %v327
    %329 = vdwg.mxu0
    %v331 = vrot.slane %v328, 4
    %v333 = vadd.f32 %v154, %v331
    %v334 = vxor.u32 %v333, 2147483648
    %v335 = vmul.f32 %v334, 1.442695
    %v336 = vpow.pop %v335
    %v337 = vadd.f32 %v336, 1.0
    %v338 = vrcp.pop %v337
    %v339 = vmul.f32 %v337, %v338
    %v340 = vsub.f32 1.0, %v339
    %v341 = vmul.f32 %v338, %v340
    %v342 = vadd.f32 %v338, %v341
    %vm343 = vweird.f32 %v337
    %vm344 = vweird.f32 %v338
    %vm345 = vmor %vm343, %vm344
    %v346 = vsel %vm345, %v338, %v342
    %v347 = vand.u32 2147483647, %v337
    %vm348 = vcmp.eq.f32.partialorder %v347, 8.507059e+37
    %v349 = vand.u32 %v337, 2147483648
    %v350 = vor.u32 1.1754944e-38, %v349
    %v351 = vsel %vm348, %v350, %v346
    %v352 = vmul.f32 1.0, %v351
    %v353 = vtanh.pop %v333
    %v355 = vrot.slane %v289, 6
    %v357 = vmul.f32 %v352, %v355
    %359 = vrot.lane.b32.xlu0 %v353, 64
    %v360 = vpop.permute.xlu0 %359
    %v362 = vmul.f32 %v352, %v360
    %364 = vrot.lane.b32.xlu0 %v362, 32
    %v365 = vpop.permute.xlu0 %364
    %v367 = vadd.f32 %v357, %v365
    %v368 = vtanh.pop %v367
    %370 = vrot.lane.b32.xlu0 %v368, 64
    %v371 = vpop.permute.xlu0 %370
    %v373 = vmul.f32 %v352, %v371
    %375 = vst.sshfl [vmem:[#allocation1] sm:$0xff pattern:$0x73625140] %v373
    %s376 = scalar_lea.vmem [#allocation1], 2
    %v377 = vld [vmem:[%s376] ss:$4 sm:$0xff]
    %378 = vrot.lane.b32.xlu0 %v377, 96
    %v379 = vpop.permute.xlu0 %378
    %vm381 = vcmask 779776
    %382 = vst.msk [vmem:[#allocation2] sm:$0x3] %vm381, %v379
    %v383 = vrot.slane %v373, 4
    %384 = vrot.lane.b32.xlu0 %v383, 32
    %v385 = vpop.permute.xlu0 %384
    %v386 = vsel %vm129, %v385, 0
    %388 = vmatpush.msra.mxu0 0.0
    %389 = vmatpush.msra.mxu0 0.0
    %390 = vmatpush.msra.mxu0 0.0
    %391 = vmatpush.msra.mxu0 0.0
    %392 = vmatpush.msra.mxu0 0.0
    %393 = vmatpush.msra.mxu0 0.0
    %394 = vmatpush.msra.mxu0 0.0
    %395 = vmatpush.msra.mxu0 0.0
    %396 = vmatpush.msra.mxu0 0.0
    %397 = vmatpush.msra.mxu0 0.0
    %398 = vmatpush.msra.mxu0 0.0
    %399 = vmatpush.msra.mxu0 0.0
    %400 = vmatpush.msra.mxu0 %v162
    %401 = vmatpush.msra.mxu0 %v161
    %402 = vmatpush.msra.mxu0 %v160
    %403 = vmatpush.msra.mxu0 %v159
    %404 = vmatmul.f32.gmra.mxu0 %v386
    %v405 = vpop.f32.mrf.mxu0
    %v406 = vadd.f32 0.0, %v405
    %407 = vdwg.mxu0
    %v409 = vrot.slane %v406, 2
    %v411 = vadd.f32 %v154, %v409
    %v412 = vxor.u32 %v411, 2147483648
    %v413 = vmul.f32 %v412, 1.442695
    %v414 = vpow.pop %v413
    %v415 = vadd.f32 %v414, 1.0
    %v416 = vrcp.pop %v415
    %v417 = vmul.f32 %v415, %v416
    %v418 = vsub.f32 1.0, %v417
    %v419 = vmul.f32 %v416, %v418
    %v420 = vadd.f32 %v416, %v419
    %vm421 = vweird.f32 %v415
    %vm422 = vweird.f32 %v416
    %vm423 = vmor %vm421, %vm422
    %v424 = vsel %vm423, %v416, %v420
    %v425 = vand.u32 2147483647, %v415
    %vm426 = vcmp.eq.f32.partialorder %v425, 8.507059e+37
    %v427 = vand.u32 %v415, 2147483648
    %v428 = vor.u32 1.1754944e-38, %v427
    %v429 = vsel %vm426, %v428, %v424
    %v430 = vmul.f32 1.0, %v429
    %v431 = vtanh.pop %v411
    %v433 = vrot.slane %v367, 6
    %v435 = vmul.f32 %v430, %v433
    %437 = vrot.lane.b32.xlu0 %v431, 64
    %v438 = vpop.permute.xlu0 %437
    %v440 = vmul.f32 %v430, %v438
    %442 = vrot.lane.b32.xlu0 %v440, 32
    %v443 = vpop.permute.xlu0 %442
    %v445 = vadd.f32 %v435, %v443
    %v446 = vtanh.pop %v445
    %448 = vrot.lane.b32.xlu0 %v446, 64
    %v449 = vpop.permute.xlu0 %448
    %v451 = vmul.f32 %v430, %v449
    %453 = vst.sshfl [vmem:[#allocation1] sm:$0xff pattern:$0x73625140] %v451
    %s454 = scalar_lea.vmem [#allocation1], 3
    %v455 = vld [vmem:[%s454] ss:$4 sm:$0xff]
    %vm457 = vcmask 1042176
    %458 = vst.msk [vmem:[#allocation2] sm:$0x3] %vm457, %v455
    %v459 = vrot.slane %v451, 6
    %460 = vrot.lane.b32.xlu0 %v459, 32
    %v461 = vpop.permute.xlu0 %460
    %v462 = vsel %vm129, %v461, 0
    %464 = vmatpush.msra.mxu0 0.0
    %465 = vmatpush.msra.mxu0 0.0
    %466 = vmatpush.msra.mxu0 0.0
    %467 = vmatpush.msra.mxu0 0.0
    %468 = vmatpush.msra.mxu0 0.0
    %469 = vmatpush.msra.mxu0 0.0
    %470 = vmatpush.msra.mxu0 0.0
    %471 = vmatpush.msra.mxu0 0.0
    %472 = vmatpush.msra.mxu0 0.0
    %473 = vmatpush.msra.mxu0 0.0
    %474 = vmatpush.msra.mxu0 0.0
    %475 = vmatpush.msra.mxu0 0.0
    %476 = vmatpush.msra.mxu0 %v162
    %477 = vmatpush.msra.mxu0 %v161
    %478 = vmatpush.msra.mxu0 %v160
    %479 = vmatpush.msra.mxu0 %v159
    %480 = vmatmul.f32.gmra.mxu0 %v462
    %v481 = vpop.f32.mrf.mxu0
    %v482 = vadd.f32 0.0, %v481
    %483 = vdwg.mxu0
    %v484 = vadd.f32 %v157, %v482
    %v485 = vxor.u32 %v484, 2147483648
    %v486 = vmul.f32 %v485, 1.442695
    %v487 = vpow.pop %v486
    %v488 = vadd.f32 %v487, 1.0
    %v489 = vrcp.pop %v488
    %v490 = vmul.f32 %v488, %v489
    %v491 = vsub.f32 1.0, %v490
    %v492 = vmul.f32 %v489, %v491
    %v493 = vadd.f32 %v489, %v492
    %vm494 = vweird.f32 %v488
    %vm495 = vweird.f32 %v489
    %vm496 = vmor %vm494, %vm495
    %v497 = vsel %vm496, %v489, %v493
    %v498 = vand.u32 2147483647, %v488
    %vm499 = vcmp.eq.f32.partialorder %v498, 8.507059e+37
    %v500 = vand.u32 %v488, 2147483648
    %v501 = vor.u32 1.1754944e-38, %v500
    %v502 = vsel %vm499, %v501, %v497
    %v503 = vmul.f32 1.0, %v502
    %v504 = vtanh.pop %v484
    %v506 = vrot.slane %v445, 6
    %v508 = vmul.f32 %v503, %v506
    %510 = vrot.lane.b32.xlu0 %v504, 64
    %v511 = vpop.permute.xlu0 %510
    %v513 = vmul.f32 %v503, %v511
    %515 = vrot.lane.b32.xlu0 %v513, 32
    %v516 = vpop.permute.xlu0 %515
    %v518 = vadd.f32 %v508, %v516
    %v519 = vtanh.pop %v518
    %521 = vrot.lane.b32.xlu0 %v519, 64
    %v522 = vpop.permute.xlu0 %521
    %v524 = vmul.f32 %v503, %v522
    %526 = vrot.lane.b32.xlu0 %v524, 32
    %v527 = vpop.permute.xlu0 %526
    %529 = vst.msk [vmem:[#allocation2 + $0x2] sm:$0x3] %vm228, %v527
    %v530 = vsel %vm129, %v527, 0
    %532 = vmatpush.msra.mxu0 0.0
    %533 = vmatpush.msra.mxu0 0.0
    %534 = vmatpush.msra.mxu0 0.0
    %535 = vmatpush.msra.mxu0 0.0
    %536 = vmatpush.msra.mxu0 0.0
    %537 = vmatpush.msra.mxu0 0.0
    %538 = vmatpush.msra.mxu0 0.0
    %539 = vmatpush.msra.mxu0 0.0
    %540 = vmatpush.msra.mxu0 0.0
    %541 = vmatpush.msra.mxu0 0.0
    %542 = vmatpush.msra.mxu0 0.0
    %543 = vmatpush.msra.mxu0 0.0
    %544 = vmatpush.msra.mxu0 %v162
    %545 = vmatpush.msra.mxu0 %v161
    %546 = vmatpush.msra.mxu0 %v160
    %547 = vmatpush.msra.mxu0 %v159
    %548 = vmatmul.f32.gmra.mxu0 %v530
    %v549 = vpop.f32.mrf.mxu0
    %v550 = vadd.f32 0.0, %v549
    %551 = vdwg.mxu0
    %v553 = vrot.slane %v550, 6
    %v555 = vadd.f32 %v157, %v553
    %v556 = vxor.u32 %v555, 2147483648
    %v557 = vmul.f32 %v556, 1.442695
    %v558 = vpow.pop %v557
    %v559 = vadd.f32 %v558, 1.0
    %v560 = vrcp.pop %v559
    %v561 = vmul.f32 %v559, %v560
    %v562 = vsub.f32 1.0, %v561
    %v563 = vmul.f32 %v560, %v562
    %v564 = vadd.f32 %v560, %v563
    %vm565 = vweird.f32 %v559
    %vm566 = vweird.f32 %v560
    %vm567 = vmor %vm565, %vm566
    %v568 = vsel %vm567, %v560, %v564
    %v569 = vand.u32 2147483647, %v559
    %vm570 = vcmp.eq.f32.partialorder %v569, 8.507059e+37
    %v571 = vand.u32 %v559, 2147483648
    %v572 = vor.u32 1.1754944e-38, %v571
    %v573 = vsel %vm570, %v572, %v568
    %v574 = vmul.f32 1.0, %v573
    %v575 = vtanh.pop %v555
    %v577 = vrot.slane %v518, 6
    %v579 = vmul.f32 %v574, %v577
    %581 = vrot.lane.b32.xlu0 %v575, 64
    %v582 = vpop.permute.xlu0 %581
    %v584 = vmul.f32 %v574, %v582
    %586 = vrot.lane.b32.xlu0 %v584, 32
    %v587 = vpop.permute.xlu0 %586
    %v589 = vadd.f32 %v579, %v587
    %v590 = vtanh.pop %v589
    %592 = vrot.lane.b32.xlu0 %v590, 64
    %v593 = vpop.permute.xlu0 %592
    %v595 = vmul.f32 %v574, %v593
    %597 = vst.sshfl [vmem:[#allocation1] sm:$0xff pattern:$0x73625140] %v595
    %s598 = scalar_lea.vmem [#allocation1], 1
    %v599 = vld [vmem:[%s598] ss:$4 sm:$0xff]
    %600 = vrot.lane.b32.xlu0 %v599, 64
    %v601 = vpop.permute.xlu0 %600
    %603 = vst.msk [vmem:[#allocation2 + $0x2] sm:$0x3] %vm303, %v601
    %v604 = vrot.slane %v595, 2
    %605 = vrot.lane.b32.xlu0 %v604, 32
    %v606 = vpop.permute.xlu0 %605
    %v607 = vsel %vm129, %v606, 0
    %609 = vmatpush.msra.mxu0 0.0
    %610 = vmatpush.msra.mxu0 0.0
    %611 = vmatpush.msra.mxu0 0.0
    %612 = vmatpush.msra.mxu0 0.0
    %613 = vmatpush.msra.mxu0 0.0
    %614 = vmatpush.msra.mxu0 0.0
    %615 = vmatpush.msra.mxu0 0.0
    %616 = vmatpush.msra.mxu0 0.0
    %617 = vmatpush.msra.mxu0 0.0
    %618 = vmatpush.msra.mxu0 0.0
    %619 = vmatpush.msra.mxu0 0.0
    %620 = vmatpush.msra.mxu0 0.0
    %621 = vmatpush.msra.mxu0 %v162
    %622 = vmatpush.msra.mxu0 %v161
    %623 = vmatpush.msra.mxu0 %v160
    %624 = vmatpush.msra.mxu0 %v159
    %625 = vmatmul.f32.gmra.mxu0 %v607
    %v626 = vpop.f32.mrf.mxu0
    %v627 = vadd.f32 0.0, %v626
    %628 = vdwg.mxu0
    %v630 = vrot.slane %v627, 4
    %v632 = vadd.f32 %v157, %v630
    %v633 = vxor.u32 %v632, 2147483648
    %v634 = vmul.f32 %v633, 1.442695
    %v635 = vpow.pop %v634
    %v636 = vadd.f32 %v635, 1.0
    %v637 = vrcp.pop %v636
    %v638 = vmul.f32 %v636, %v637
    %v639 = vsub.f32 1.0, %v638
    %v640 = vmul.f32 %v637, %v639
    %v641 = vadd.f32 %v637, %v640
    %vm642 = vweird.f32 %v636
    %vm643 = vweird.f32 %v637
    %vm644 = vmor %vm642, %vm643
    %v645 = vsel %vm644, %v637, %v641
    %v646 = vand.u32 2147483647, %v636
    %vm647 = vcmp.eq.f32.partialorder %v646, 8.507059e+37
    %v648 = vand.u32 %v636, 2147483648
    %v649 = vor.u32 1.1754944e-38, %v648
    %v650 = vsel %vm647, %v649, %v645
    %v651 = vmul.f32 1.0, %v650
    %v652 = vtanh.pop %v632
    %v654 = vrot.slane %v589, 6
    %v656 = vmul.f32 %v651, %v654
    %658 = vrot.lane.b32.xlu0 %v652, 64
    %v659 = vpop.permute.xlu0 %658
    %v661 = vmul.f32 %v651, %v659
    %663 = vrot.lane.b32.xlu0 %v661, 32
    %v664 = vpop.permute.xlu0 %663
    %v666 = vadd.f32 %v656, %v664
    %v667 = vtanh.pop %v666
    %669 = vrot.lane.b32.xlu0 %v667, 64
    %v670 = vpop.permute.xlu0 %669
    %v672 = vmul.f32 %v651, %v670
    %674 = vst.sshfl [vmem:[#allocation1] sm:$0xff pattern:$0x73625140] %v672
    %s675 = scalar_lea.vmem [#allocation1], 2
    %v676 = vld [vmem:[%s675] ss:$4 sm:$0xff]
    %677 = vrot.lane.b32.xlu0 %v676, 96
    %v678 = vpop.permute.xlu0 %677
    %680 = vst.msk [vmem:[#allocation2 + $0x2] sm:$0x3] %vm381, %v678
    %v681 = vrot.slane %v672, 4
    %682 = vrot.lane.b32.xlu0 %v681, 32
    %v683 = vpop.permute.xlu0 %682
    %v684 = vsel %vm129, %v683, 0
    %686 = vmatpush.msra.mxu0 0.0
    %687 = vmatpush.msra.mxu0 0.0
    %688 = vmatpush.msra.mxu0 0.0
    %689 = vmatpush.msra.mxu0 0.0
    %690 = vmatpush.msra.mxu0 0.0
    %691 = vmatpush.msra.mxu0 0.0
    %692 = vmatpush.msra.mxu0 0.0
    %693 = vmatpush.msra.mxu0 0.0
    %694 = vmatpush.msra.mxu0 0.0
    %695 = vmatpush.msra.mxu0 0.0
    %696 = vmatpush.msra.mxu0 0.0
    %697 = vmatpush.msra.mxu0 0.0
    %698 = vmatpush.msra.mxu0 %v162
    %699 = vmatpush.msra.mxu0 %v161
    %700 = vmatpush.msra.mxu0 %v160
    %701 = vmatpush.msra.mxu0 %v159
    %702 = vmatmul.f32.gmra.mxu0 %v684
    %v703 = vpop.f32.mrf.mxu0
    %v704 = vadd.f32 0.0, %v703
    %705 = vdwg.mxu0
    %v707 = vrot.slane %v704, 2
    %v709 = vadd.f32 %v157, %v707
    %v710 = vxor.u32 %v709, 2147483648
    %v711 = vmul.f32 %v710, 1.442695
    %v712 = vpow.pop %v711
    %v713 = vadd.f32 %v712, 1.0
    %v714 = vrcp.pop %v713
    %v715 = vmul.f32 %v713, %v714
    %v716 = vsub.f32 1.0, %v715
    %v717 = vmul.f32 %v714, %v716
    %v718 = vadd.f32 %v714, %v717
    %vm719 = vweird.f32 %v713
    %vm720 = vweird.f32 %v714
    %vm721 = vmor %vm719, %vm720
    %v722 = vsel %vm721, %v714, %v718
    %v723 = vand.u32 2147483647, %v713
    %vm724 = vcmp.eq.f32.partialorder %v723, 8.507059e+37
    %v725 = vand.u32 %v713, 2147483648
    %v726 = vor.u32 1.1754944e-38, %v725
    %v727 = vsel %vm724, %v726, %v722
    %v728 = vmul.f32 1.0, %v727
    %v729 = vtanh.pop %v709
    %v731 = vrot.slane %v666, 6
    %v733 = vmul.f32 %v728, %v731
    %735 = vrot.lane.b32.xlu0 %v729, 64
    %v736 = vpop.permute.xlu0 %735
    %v738 = vmul.f32 %v728, %v736
    %740 = vrot.lane.b32.xlu0 %v738, 32
    %v741 = vpop.permute.xlu0 %740
    %v743 = vadd.f32 %v733, %v741
    %v744 = vtanh.pop %v743
    %746 = vrot.lane.b32.xlu0 %v744, 64
    %v747 = vpop.permute.xlu0 %746
    %v749 = vmul.f32 %v728, %v747
    %751 = vst.sshfl [vmem:[#allocation1] sm:$0xff pattern:$0x73625140] %v749
    %s752 = scalar_lea.vmem [#allocation1], 3
    %v753 = vld [vmem:[%s752] ss:$4 sm:$0xff]
    %755 = vst.msk [vmem:[#allocation2 + $0x2] sm:$0x3] %vm457, %v753
    %v756 = vld [vmem:[#allocation2] sm:$0xf]
    %v757 = vld [vmem:[#allocation9] sm:$0xff]
    %v758 = vld [vmem:[#allocation9 + $0x8] sm:$0xff]
    %v759 = vld [vmem:[#allocation9 + $0x10] sm:$0xff]
    %v760 = vld [vmem:[#allocation9 + $0x18] sm:$0xff]
    %v761 = vld [vmem:[#allocation9 + $0x20] sm:$0xff]
    %v762 = vld [vmem:[#allocation9 + $0x28] sm:$0xff]
    %v763 = vld [vmem:[#allocation9 + $0x30] sm:$0xff]
    %v764 = vld [vmem:[#allocation9 + $0x38] sm:$0xff]
    %v765 = vld [vmem:[#allocation9 + $0x40] sm:$0xff]
    %v766 = vld [vmem:[#allocation9 + $0x48] sm:$0xff]
    %v767 = vld [vmem:[#allocation9 + $0x50] sm:$0xff]
    %v768 = vld [vmem:[#allocation9 + $0x58] sm:$0xff]
    %v769 = vld [vmem:[#allocation9 + $0x60] sm:$0xff]
    %v770 = vld [vmem:[#allocation9 + $0x68] sm:$0xff]
    %v771 = vld [vmem:[#allocation9 + $0x70] sm:$0xff]
    %v772 = vld [vmem:[#allocation9 + $0x78] sm:$0xff]
    %v773 = vld [vmem:[#allocation9 + $0x80] sm:$0xff]
    %v774 = vld [vmem:[#allocation9 + $0x88] sm:$0xff]
    %v775 = vld [vmem:[#allocation9 + $0x90] sm:$0xff]
    %v776 = vld [vmem:[#allocation9 + $0x98] sm:$0xff]
    %v777 = vld [vmem:[#allocation9 + $0xa0] sm:$0xff]
    %v778 = vld [vmem:[#allocation9 + $0xa8] sm:$0xff]
    %v779 = vld [vmem:[#allocation9 + $0xb0] sm:$0xff]
    %v780 = vld [vmem:[#allocation9 + $0xb8] sm:$0xff]
    %v781 = vld [vmem:[#allocation9 + $0xc0] sm:$0xff]
    %v782 = vld [vmem:[#allocation9 + $0xc8] sm:$0xff]
    %v783 = vld [vmem:[#allocation9 + $0xd0] sm:$0xff]
    %v784 = vld [vmem:[#allocation9 + $0xd8] sm:$0xff]
    %v785 = vld [vmem:[#allocation9 + $0xe0] sm:$0xff]
    %v786 = vld [vmem:[#allocation9 + $0xe8] sm:$0xff]
    %v787 = vld [vmem:[#allocation9 + $0xf0] sm:$0xff]
    %v788 = vld [vmem:[#allocation9 + $0xf8] sm:$0xff]
    %v789 = vld [vmem:[#allocation9 + $0x100] sm:$0xff]
    %v790 = vld [vmem:[#allocation9 + $0x108] sm:$0xff]
    %v791 = vld [vmem:[#allocation9 + $0x110] sm:$0xff]
    %v792 = vld [vmem:[#allocation9 + $0x118] sm:$0xff]
    %v793 = vld [vmem:[#allocation9 + $0x120] sm:$0xff]
    %v794 = vld [vmem:[#allocation9 + $0x128] sm:$0xff]
    %v795 = vld [vmem:[#allocation9 + $0x130] sm:$0xff]
    %v796 = vld [vmem:[#allocation9 + $0x138] sm:$0xff]
    %v797 = vld [vmem:[#allocation9 + $0x140] sm:$0xff]
    %v798 = vld [vmem:[#allocation9 + $0x148] sm:$0xff]
    %v799 = vld [vmem:[#allocation9 + $0x150] sm:$0xff]
    %v800 = vld [vmem:[#allocation9 + $0x158] sm:$0xff]
    %v801 = vld [vmem:[#allocation9 + $0x160] sm:$0xff]
    %v802 = vld [vmem:[#allocation9 + $0x168] sm:$0xff]
    %v803 = vld [vmem:[#allocation9 + $0x170] sm:$0xff]
    %v804 = vld [vmem:[#allocation9 + $0x178] sm:$0xff]
    %v805 = vld [vmem:[#allocation9 + $0x180] sm:$0xff]
    %v806 = vld [vmem:[#allocation9 + $0x188] sm:$0xff]
    %v807 = vld [vmem:[#allocation9 + $0x190] sm:$0xff]
    %v808 = vld [vmem:[#allocation9 + $0x198] sm:$0xff]
    %v809 = vld [vmem:[#allocation9 + $0x1a0] sm:$0xff]
    %v810 = vld [vmem:[#allocation9 + $0x1a8] sm:$0xff]
    %v811 = vld [vmem:[#allocation9 + $0x1b0] sm:$0xff]
    %v812 = vld [vmem:[#allocation9 + $0x1b8] sm:$0xff]
    %v813 = vld [vmem:[#allocation9 + $0x1c0] sm:$0xff]
    %v814 = vld [vmem:[#allocation9 + $0x1c8] sm:$0xff]
    %v815 = vld [vmem:[#allocation9 + $0x1d0] sm:$0xff]
    %v816 = vld [vmem:[#allocation9 + $0x1d8] sm:$0xff]
    %v817 = vld [vmem:[#allocation9 + $0x1e0] sm:$0xff]
    %v818 = vld [vmem:[#allocation9 + $0x1e8] sm:$0xff]
    %v819 = vld [vmem:[#allocation9 + $0x1f0] sm:$0xff]
    %v820 = vld [vmem:[#allocation9 + $0x1f8] sm:$0xff]
    %v821 = vld [vmem:[#allocation9 + $0x200] sm:$0xff]
    %v822 = vld [vmem:[#allocation9 + $0x208] sm:$0xff]
    %v823 = vld [vmem:[#allocation9 + $0x210] sm:$0xff]
    %v824 = vld [vmem:[#allocation9 + $0x218] sm:$0xff]
    %v825 = vld [vmem:[#allocation9 + $0x220] sm:$0xff]
    %v826 = vld [vmem:[#allocation9 + $0x228] sm:$0xff]
    %v827 = vld [vmem:[#allocation9 + $0x230] sm:$0xff]
    %v828 = vld [vmem:[#allocation9 + $0x238] sm:$0xff]
    %v829 = vld [vmem:[#allocation9 + $0x240] sm:$0xff]
    %v830 = vld [vmem:[#allocation9 + $0x248] sm:$0xff]
    %v831 = vld [vmem:[#allocation9 + $0x250] sm:$0xff]
    %v832 = vld [vmem:[#allocation9 + $0x258] sm:$0xff]
    %v833 = vld [vmem:[#allocation9 + $0x260] sm:$0xff]
    %v834 = vld [vmem:[#allocation9 + $0x268] sm:$0xff]
    %v835 = vld [vmem:[#allocation9 + $0x270] sm:$0xff]
    %v836 = vld [vmem:[#allocation9 + $0x278] sm:$0xff]
    %v837 = vld [vmem:[#allocation9 + $0x280] sm:$0xff]
    %v838 = vld [vmem:[#allocation9 + $0x288] sm:$0xff]
    %v839 = vld [vmem:[#allocation9 + $0x290] sm:$0xff]
    %v840 = vld [vmem:[#allocation9 + $0x298] sm:$0xff]
    %v841 = vld [vmem:[#allocation9 + $0x2a0] sm:$0xff]
    %v842 = vld [vmem:[#allocation9 + $0x2a8] sm:$0xff]
    %v843 = vld [vmem:[#allocation9 + $0x2b0] sm:$0xff]
    %v844 = vld [vmem:[#allocation9 + $0x2b8] sm:$0xff]
    %v845 = vld [vmem:[#allocation9 + $0x2c0] sm:$0xff]
    %v846 = vld [vmem:[#allocation9 + $0x2c8] sm:$0xff]
    %v847 = vld [vmem:[#allocation9 + $0x2d0] sm:$0xff]
    %v848 = vld [vmem:[#allocation9 + $0x2d8] sm:$0xff]
    %v849 = vld [vmem:[#allocation9 + $0x2e0] sm:$0xff]
    %v850 = vld [vmem:[#allocation9 + $0x2e8] sm:$0xff]
    %v851 = vld [vmem:[#allocation9 + $0x2f0] sm:$0xff]
    %v852 = vld [vmem:[#allocation9 + $0x2f8] sm:$0xff]
    %v853 = vld [vmem:[#allocation9 + $0x300] sm:$0xff]
    %v854 = vld [vmem:[#allocation9 + $0x308] sm:$0xff]
    %v855 = vld [vmem:[#allocation9 + $0x310] sm:$0xff]
    %v856 = vld [vmem:[#allocation9 + $0x318] sm:$0xff]
    %v857 = vld [vmem:[#allocation9 + $0x320] sm:$0xff]
    %v858 = vld [vmem:[#allocation9 + $0x328] sm:$0xff]
    %v859 = vld [vmem:[#allocation9 + $0x330] sm:$0xff]
    %v860 = vld [vmem:[#allocation9 + $0x338] sm:$0xff]
    %v861 = vld [vmem:[#allocation9 + $0x340] sm:$0xff]
    %v862 = vld [vmem:[#allocation9 + $0x348] sm:$0xff]
    %v863 = vld [vmem:[#allocation9 + $0x350] sm:$0xff]
    %v864 = vld [vmem:[#allocation9 + $0x358] sm:$0xff]
    %v865 = vld [vmem:[#allocation9 + $0x360] sm:$0xff]
    %v866 = vld [vmem:[#allocation9 + $0x368] sm:$0xff]
    %v867 = vld [vmem:[#allocation9 + $0x370] sm:$0xff]
    %v868 = vld [vmem:[#allocation9 + $0x378] sm:$0xff]
    %v869 = vld [vmem:[#allocation9 + $0x380] sm:$0xff]
    %v870 = vld [vmem:[#allocation9 + $0x388] sm:$0xff]
    %v871 = vld [vmem:[#allocation9 + $0x390] sm:$0xff]
    %v872 = vld [vmem:[#allocation9 + $0x398] sm:$0xff]
    %v873 = vld [vmem:[#allocation9 + $0x3a0] sm:$0xff]
    %v874 = vld [vmem:[#allocation9 + $0x3a8] sm:$0xff]
    %v875 = vld [vmem:[#allocation9 + $0x3b0] sm:$0xff]
    %v876 = vld [vmem:[#allocation9 + $0x3b8] sm:$0xff]
    %v877 = vld [vmem:[#allocation9 + $0x3c0] sm:$0xff]
    %v878 = vld [vmem:[#allocation9 + $0x3c8] sm:$0xff]
    %v879 = vld [vmem:[#allocation9 + $0x3d0] sm:$0xff]
    %v880 = vld [vmem:[#allocation9 + $0x3d8] sm:$0xff]
    %v881 = vld [vmem:[#allocation9 + $0x3e0] sm:$0xff]
    %v882 = vld [vmem:[#allocation9 + $0x3e8] sm:$0xff]
    %v883 = vld [vmem:[#allocation9 + $0x3f0] sm:$0xff]
    %v884 = vld [vmem:[#allocation9 + $0x3f8] sm:$0xff]
    %v885 = vld [vmem:[#allocation9 + $0x400] sm:$0xff]
    %v886 = vld [vmem:[#allocation9 + $0x408] sm:$0xff]
    %v887 = vld [vmem:[#allocation9 + $0x410] sm:$0xff]
    %v888 = vld [vmem:[#allocation9 + $0x418] sm:$0xff]
    %v889 = vld [vmem:[#allocation9 + $0x420] sm:$0xff]
    %v890 = vld [vmem:[#allocation9 + $0x428] sm:$0xff]
    %v891 = vld [vmem:[#allocation9 + $0x430] sm:$0xff]
    %v892 = vld [vmem:[#allocation9 + $0x438] sm:$0xff]
    %v893 = vld [vmem:[#allocation9 + $0x440] sm:$0xff]
    %v894 = vld [vmem:[#allocation9 + $0x448] sm:$0xff]
    %v895 = vld [vmem:[#allocation9 + $0x450] sm:$0xff]
    %v896 = vld [vmem:[#allocation9 + $0x458] sm:$0xff]
    %v897 = vld [vmem:[#allocation9 + $0x460] sm:$0xff]
    %v898 = vld [vmem:[#allocation9 + $0x468] sm:$0xff]
    %v899 = vld [vmem:[#allocation9 + $0x470] sm:$0xff]
    %v900 = vld [vmem:[#allocation9 + $0x478] sm:$0xff]
    %v901 = vld [vmem:[#allocation9 + $0x480] sm:$0xff]
    %v902 = vld [vmem:[#allocation9 + $0x488] sm:$0xff]
    %v903 = vld [vmem:[#allocation9 + $0x490] sm:$0xff]
    %v904 = vld [vmem:[#allocation9 + $0x498] sm:$0xff]
    %v905 = vld [vmem:[#allocation9 + $0x4a0] sm:$0xff]
    %v906 = vld [vmem:[#allocation9 + $0x4a8] sm:$0xff]
    %v907 = vld [vmem:[#allocation9 + $0x4b0] sm:$0xff]
    %v908 = vld [vmem:[#allocation9 + $0x4b8] sm:$0xff]
    %v909 = vld [vmem:[#allocation9 + $0x4c0] sm:$0xff]
    %v910 = vld [vmem:[#allocation9 + $0x4c8] sm:$0xff]
    %v911 = vld [vmem:[#allocation9 + $0x4d0] sm:$0xff]
    %v912 = vld [vmem:[#allocation9 + $0x4d8] sm:$0xff]
    %v913 = vld [vmem:[#allocation9 + $0x4e0] sm:$0xff]
    %v914 = vld [vmem:[#allocation9 + $0x4e8] sm:$0xff]
    %v915 = vld [vmem:[#allocation9 + $0x4f0] sm:$0xff]
    %v916 = vld [vmem:[#allocation9 + $0x4f8] sm:$0xff]
    %v917 = vld [vmem:[#allocation9 + $0x500] sm:$0xff]
    %v918 = vld [vmem:[#allocation9 + $0x508] sm:$0xff]
    %v919 = vld [vmem:[#allocation9 + $0x510] sm:$0xff]
    %v920 = vld [vmem:[#allocation9 + $0x518] sm:$0xff]
    %v921 = vld [vmem:[#allocation9 + $0x520] sm:$0xff]
    %v922 = vld [vmem:[#allocation9 + $0x528] sm:$0xff]
    %v923 = vld [vmem:[#allocation9 + $0x530] sm:$0xff]
    %v924 = vld [vmem:[#allocation9 + $0x538] sm:$0xff]
    %v925 = vld [vmem:[#allocation9 + $0x540] sm:$0xff]
    %v926 = vld [vmem:[#allocation9 + $0x548] sm:$0xff]
    %v927 = vld [vmem:[#allocation9 + $0x550] sm:$0xff]
    %v928 = vld [vmem:[#allocation9 + $0x558] sm:$0xff]
    %v929 = vld [vmem:[#allocation9 + $0x560] sm:$0xff]
    %v930 = vld [vmem:[#allocation9 + $0x568] sm:$0xff]
    %v931 = vld [vmem:[#allocation9 + $0x570] sm:$0xff]
    %v932 = vld [vmem:[#allocation9 + $0x578] sm:$0xff]
    %v933 = vld [vmem:[#allocation9 + $0x580] sm:$0xff]
    %v934 = vld [vmem:[#allocation9 + $0x588] sm:$0xff]
    %v935 = vld [vmem:[#allocation9 + $0x590] sm:$0xff]
    %v936 = vld [vmem:[#allocation9 + $0x598] sm:$0xff]
    %v937 = vld [vmem:[#allocation9 + $0x5a0] sm:$0xff]
    %v938 = vld [vmem:[#allocation9 + $0x5a8] sm:$0xff]
    %v939 = vld [vmem:[#allocation9 + $0x5b0] sm:$0xff]
    %v940 = vld [vmem:[#allocation9 + $0x5b8] sm:$0xff]
    %v941 = vld [vmem:[#allocation9 + $0x5c0] sm:$0xff]
    %v942 = vld [vmem:[#allocation9 + $0x5c8] sm:$0xff]
    %v943 = vld [vmem:[#allocation9 + $0x5d0] sm:$0xff]
    %v944 = vld [vmem:[#allocation9 + $0x5d8] sm:$0xff]
    %v945 = vld [vmem:[#allocation9 + $0x5e0] sm:$0xff]
    %v946 = vld [vmem:[#allocation9 + $0x5e8] sm:$0xff]
    %v947 = vld [vmem:[#allocation9 + $0x5f0] sm:$0xff]
    %v948 = vld [vmem:[#allocation9 + $0x5f8] sm:$0xff]
    %v949 = vld [vmem:[#allocation9 + $0x600] sm:$0xff]
    %v950 = vld [vmem:[#allocation9 + $0x608] sm:$0xff]
    %v951 = vld [vmem:[#allocation9 + $0x610] sm:$0xff]
    %v952 = vld [vmem:[#allocation9 + $0x618] sm:$0xff]
    %v953 = vld [vmem:[#allocation9 + $0x620] sm:$0xff]
    %v954 = vld [vmem:[#allocation9 + $0x628] sm:$0xff]
    %v955 = vld [vmem:[#allocation9 + $0x630] sm:$0xff]
    %v956 = vld [vmem:[#allocation9 + $0x638] sm:$0xff]
    %v957 = vld [vmem:[#allocation9 + $0x640] sm:$0xff]
    %v958 = vld [vmem:[#allocation9 + $0x648] sm:$0xff]
    %v959 = vld [vmem:[#allocation9 + $0x650] sm:$0xff]
    %v960 = vld [vmem:[#allocation9 + $0x658] sm:$0xff]
    %v961 = vld [vmem:[#allocation9 + $0x660] sm:$0xff]
    %v962 = vld [vmem:[#allocation9 + $0x668] sm:$0xff]
    %v963 = vld [vmem:[#allocation9 + $0x670] sm:$0xff]
    %v964 = vld [vmem:[#allocation9 + $0x678] sm:$0xff]
    %v965 = vld [vmem:[#allocation9 + $0x680] sm:$0xff]
    %v966 = vld [vmem:[#allocation9 + $0x688] sm:$0xff]
    %v967 = vld [vmem:[#allocation9 + $0x690] sm:$0xff]
    %v968 = vld [vmem:[#allocation9 + $0x698] sm:$0xff]
    %v969 = vld [vmem:[#allocation9 + $0x6a0] sm:$0xff]
    %v970 = vld [vmem:[#allocation9 + $0x6a8] sm:$0xff]
    %v971 = vld [vmem:[#allocation9 + $0x6b0] sm:$0xff]
    %v972 = vld [vmem:[#allocation9 + $0x6b8] sm:$0xff]
    %v973 = vld [vmem:[#allocation9 + $0x6c0] sm:$0xff]
    %v974 = vld [vmem:[#allocation9 + $0x6c8] sm:$0xff]
    %v975 = vld [vmem:[#allocation9 + $0x6d0] sm:$0xff]
    %v976 = vld [vmem:[#allocation9 + $0x6d8] sm:$0xff]
    %v977 = vld [vmem:[#allocation9 + $0x6e0] sm:$0xff]
    %v978 = vld [vmem:[#allocation9 + $0x6e8] sm:$0xff]
    %v979 = vld [vmem:[#allocation9 + $0x6f0] sm:$0xff]
    %v980 = vld [vmem:[#allocation9 + $0x6f8] sm:$0xff]
    %v981 = vld [vmem:[#allocation9 + $0x700] sm:$0xff]
    %v982 = vld [vmem:[#allocation9 + $0x708] sm:$0xff]
    %v983 = vld [vmem:[#allocation9 + $0x710] sm:$0xff]
    %v984 = vld [vmem:[#allocation9 + $0x718] sm:$0xff]
    %v985 = vld [vmem:[#allocation9 + $0x720] sm:$0xff]
    %v986 = vld [vmem:[#allocation9 + $0x728] sm:$0xff]
    %v987 = vld [vmem:[#allocation9 + $0x730] sm:$0xff]
    %v988 = vld [vmem:[#allocation9 + $0x738] sm:$0xff]
    %v989 = vld [vmem:[#allocation9 + $0x740] sm:$0xff]
    %v990 = vld [vmem:[#allocation9 + $0x748] sm:$0xff]
    %v991 = vld [vmem:[#allocation9 + $0x750] sm:$0xff]
    %v992 = vld [vmem:[#allocation9 + $0x758] sm:$0xff]
    %v993 = vld [vmem:[#allocation9 + $0x760] sm:$0xff]
    %v994 = vld [vmem:[#allocation9 + $0x768] sm:$0xff]
    %v995 = vld [vmem:[#allocation9 + $0x770] sm:$0xff]
    %v996 = vld [vmem:[#allocation9 + $0x778] sm:$0xff]
    %v997 = vld [vmem:[#allocation9 + $0x780] sm:$0xff]
    %v998 = vld [vmem:[#allocation9 + $0x788] sm:$0xff]
    %v999 = vld [vmem:[#allocation9 + $0x790] sm:$0xff]
    %v1000 = vld [vmem:[#allocation9 + $0x798] sm:$0xff]
    %v1001 = vld [vmem:[#allocation9 + $0x7a0] sm:$0xff]
    %v1002 = vld [vmem:[#allocation9 + $0x7a8] sm:$0xff]
    %v1003 = vld [vmem:[#allocation9 + $0x7b0] sm:$0xff]
    %v1004 = vld [vmem:[#allocation9 + $0x7b8] sm:$0xff]
    %v1005 = vld [vmem:[#allocation9 + $0x7c0] sm:$0xff]
    %v1006 = vld [vmem:[#allocation9 + $0x7c8] sm:$0xff]
    %v1007 = vld [vmem:[#allocation9 + $0x7d0] sm:$0xff]
    %v1008 = vld [vmem:[#allocation9 + $0x7d8] sm:$0xff]
    %v1009 = vld [vmem:[#allocation9 + $0x7e0] sm:$0xff]
    %v1010 = vld [vmem:[#allocation9 + $0x7e8] sm:$0xff]
    %v1011 = vld [vmem:[#allocation9 + $0x7f0] sm:$0xff]
    %v1012 = vld [vmem:[#allocation9 + $0x7f8] sm:$0xff]
    %v1013 = vld [vmem:[#allocation11] sm:$0xff]
    %v1015 = vperm.slane %v1013, 0
    %v1016 = vperm.slane %v1013, 1
    %v1017 = vperm.slane %v1013, 2
    %v1018 = vperm.slane %v1013, 3
    %v1019 = vperm.slane %v1013, 4
    %v1020 = vperm.slane %v1013, 5
    %v1021 = vperm.slane %v1013, 6
    %v1022 = vperm.slane %v1013, 7
    %1032 = vst [vmem:[#allocation1] ss:$4 sm:$0xff] %v756
    %v1033 = vld.sshfl [vmem:[#allocation1] sm:$0xff pattern:$0x73625140]
    %v1034 = vld.sshfl [vmem:[#allocation1 + $0x8] sm:$0xff pattern:$0x73625140]
    %1037 = vmatpush.msra.mxu0 %v877
    %1038 = vmatpush.msra.mxu0 %v869
    %1039 = vmatpush.msra.mxu0 %v861
    %1040 = vmatpush.msra.mxu0 %v853
    %1041 = vmatpush.msra.mxu0 %v845
    %1042 = vmatpush.msra.mxu0 %v837
    %1043 = vmatpush.msra.mxu0 %v829
    %1044 = vmatpush.msra.mxu0 %v821
    %1045 = vmatpush.msra.mxu0 %v813
    %1046 = vmatpush.msra.mxu0 %v805
    %1047 = vmatpush.msra.mxu0 %v797
    %1048 = vmatpush.msra.mxu0 %v789
    %1049 = vmatpush.msra.mxu0 %v781
    %1050 = vmatpush.msra.mxu0 %v773
    %1051 = vmatpush.msra.mxu0 %v765
    %1052 = vmatpush.msra.mxu0 %v757
    %1053 = vmatmul.f32.gmra.mxu0 %v1033
    %v1054 = vpop.f32.mrf.mxu0
    %v1055 = vadd.f32 %v1015, %v1054
    %1056 = vdwg.mxu0
    %1057 = vmatpush.msra.mxu0 %v1005
    %1058 = vmatpush.msra.mxu0 %v997
    %1059 = vmatpush.msra.mxu0 %v989
    %1060 = vmatpush.msra.mxu0 %v981
    %1061 = vmatpush.msra.mxu0 %v973
    %1062 = vmatpush.msra.mxu0 %v965
    %1063 = vmatpush.msra.mxu0 %v957
    %1064 = vmatpush.msra.mxu0 %v949
    %1065 = vmatpush.msra.mxu0 %v941
    %1066 = vmatpush.msra.mxu0 %v933
    %1067 = vmatpush.msra.mxu0 %v925
    %1068 = vmatpush.msra.mxu0 %v917
    %1069 = vmatpush.msra.mxu0 %v909
    %1070 = vmatpush.msra.mxu0 %v901
    %1071 = vmatpush.msra.mxu0 %v893
    %1072 = vmatpush.msra.mxu0 %v885
    %1073 = vmatmul.f32.gmra.mxu0 %v1034
    %v1074 = vpop.f32.mrf.mxu0
    %v1075 = vadd.f32 %v1055, %v1074
    %1076 = vdwg.mxu0
    %1077 = vmatpush.msra.mxu0 %v878
    %1078 = vmatpush.msra.mxu0 %v870
    %1079 = vmatpush.msra.mxu0 %v862
    %1080 = vmatpush.msra.mxu0 %v854
    %1081 = vmatpush.msra.mxu0 %v846
    %1082 = vmatpush.msra.mxu0 %v838
    %1083 = vmatpush.msra.mxu0 %v830
    %1084 = vmatpush.msra.mxu0 %v822
    %1085 = vmatpush.msra.mxu0 %v814
    %1086 = vmatpush.msra.mxu0 %v806
    %1087 = vmatpush.msra.mxu0 %v798
    %1088 = vmatpush.msra.mxu0 %v790
    %1089 = vmatpush.msra.mxu0 %v782
    %1090 = vmatpush.msra.mxu0 %v774
    %1091 = vmatpush.msra.mxu0 %v766
    %1092 = vmatpush.msra.mxu0 %v758
    %1093 = vmatmul.f32.gmra.mxu0 %v1033
    %v1094 = vpop.f32.mrf.mxu0
    %v1095 = vadd.f32 %v1016, %v1094
    %1096 = vdwg.mxu0
    %1097 = vmatpush.msra.mxu0 %v1006
    %1098 = vmatpush.msra.mxu0 %v998
    %1099 = vmatpush.msra.mxu0 %v990
    %1100 = vmatpush.msra.mxu0 %v982
    %1101 = vmatpush.msra.mxu0 %v974
    %1102 = vmatpush.msra.mxu0 %v966
    %1103 = vmatpush.msra.mxu0 %v958
    %1104 = vmatpush.msra.mxu0 %v950
    %1105 = vmatpush.msra.mxu0 %v942
    %1106 = vmatpush.msra.mxu0 %v934
    %1107 = vmatpush.msra.mxu0 %v926
    %1108 = vmatpush.msra.mxu0 %v918
    %1109 = vmatpush.msra.mxu0 %v910
    %1110 = vmatpush.msra.mxu0 %v902
    %1111 = vmatpush.msra.mxu0 %v894
    %1112 = vmatpush.msra.mxu0 %v886
    %1113 = vmatmul.f32.gmra.mxu0 %v1034
    %v1114 = vpop.f32.mrf.mxu0
    %v1115 = vadd.f32 %v1095, %v1114
    %1116 = vdwg.mxu0
    %1117 = vmatpush.msra.mxu0 %v879
    %1118 = vmatpush.msra.mxu0 %v871
    %1119 = vmatpush.msra.mxu0 %v863
    %1120 = vmatpush.msra.mxu0 %v855
    %1121 = vmatpush.msra.mxu0 %v847
    %1122 = vmatpush.msra.mxu0 %v839
    %1123 = vmatpush.msra.mxu0 %v831
    %1124 = vmatpush.msra.mxu0 %v823
    %1125 = vmatpush.msra.mxu0 %v815
    %1126 = vmatpush.msra.mxu0 %v807
    %1127 = vmatpush.msra.mxu0 %v799
    %1128 = vmatpush.msra.mxu0 %v791
    %1129 = vmatpush.msra.mxu0 %v783
    %1130 = vmatpush.msra.mxu0 %v775
    %1131 = vmatpush.msra.mxu0 %v767
    %1132 = vmatpush.msra.mxu0 %v759
    %1133 = vmatmul.f32.gmra.mxu0 %v1033
    %v1134 = vpop.f32.mrf.mxu0
    %v1135 = vadd.f32 %v1017, %v1134
    %1136 = vdwg.mxu0
    %1137 = vmatpush.msra.mxu0 %v1007
    %1138 = vmatpush.msra.mxu0 %v999
    %1139 = vmatpush.msra.mxu0 %v991
    %1140 = vmatpush.msra.mxu0 %v983
    %1141 = vmatpush.msra.mxu0 %v975
    %1142 = vmatpush.msra.mxu0 %v967
    %1143 = vmatpush.msra.mxu0 %v959
    %1144 = vmatpush.msra.mxu0 %v951
    %1145 = vmatpush.msra.mxu0 %v943
    %1146 = vmatpush.msra.mxu0 %v935
    %1147 = vmatpush.msra.mxu0 %v927
    %1148 = vmatpush.msra.mxu0 %v919
    %1149 = vmatpush.msra.mxu0 %v911
    %1150 = vmatpush.msra.mxu0 %v903
    %1151 = vmatpush.msra.mxu0 %v895
    %1152 = vmatpush.msra.mxu0 %v887
    %1153 = vmatmul.f32.gmra.mxu0 %v1034
    %v1154 = vpop.f32.mrf.mxu0
    %v1155 = vadd.f32 %v1135, %v1154
    %1156 = vdwg.mxu0
    %1157 = vmatpush.msra.mxu0 %v880
    %1158 = vmatpush.msra.mxu0 %v872
    %1159 = vmatpush.msra.mxu0 %v864
    %1160 = vmatpush.msra.mxu0 %v856
    %1161 = vmatpush.msra.mxu0 %v848
    %1162 = vmatpush.msra.mxu0 %v840
    %1163 = vmatpush.msra.mxu0 %v832
    %1164 = vmatpush.msra.mxu0 %v824
    %1165 = vmatpush.msra.mxu0 %v816
    %1166 = vmatpush.msra.mxu0 %v808
    %1167 = vmatpush.msra.mxu0 %v800
    %1168 = vmatpush.msra.mxu0 %v792
    %1169 = vmatpush.msra.mxu0 %v784
    %1170 = vmatpush.msra.mxu0 %v776
    %1171 = vmatpush.msra.mxu0 %v768
    %1172 = vmatpush.msra.mxu0 %v760
    %1173 = vmatmul.f32.gmra.mxu0 %v1033
    %v1174 = vpop.f32.mrf.mxu0
    %v1175 = vadd.f32 %v1018, %v1174
    %1176 = vdwg.mxu0
    %1177 = vmatpush.msra.mxu0 %v1008
    %1178 = vmatpush.msra.mxu0 %v1000
    %1179 = vmatpush.msra.mxu0 %v992
    %1180 = vmatpush.msra.mxu0 %v984
    %1181 = vmatpush.msra.mxu0 %v976
    %1182 = vmatpush.msra.mxu0 %v968
    %1183 = vmatpush.msra.mxu0 %v960
    %1184 = vmatpush.msra.mxu0 %v952
    %1185 = vmatpush.msra.mxu0 %v944
    %1186 = vmatpush.msra.mxu0 %v936
    %1187 = vmatpush.msra.mxu0 %v928
    %1188 = vmatpush.msra.mxu0 %v920
    %1189 = vmatpush.msra.mxu0 %v912
    %1190 = vmatpush.msra.mxu0 %v904
    %1191 = vmatpush.msra.mxu0 %v896
    %1192 = vmatpush.msra.mxu0 %v888
    %1193 = vmatmul.f32.gmra.mxu0 %v1034
    %v1194 = vpop.f32.mrf.mxu0
    %v1195 = vadd.f32 %v1175, %v1194
    %1196 = vdwg.mxu0
    %1197 = vmatpush.msra.mxu0 %v881
    %1198 = vmatpush.msra.mxu0 %v873
    %1199 = vmatpush.msra.mxu0 %v865
    %1200 = vmatpush.msra.mxu0 %v857
    %1201 = vmatpush.msra.mxu0 %v849
    %1202 = vmatpush.msra.mxu0 %v841
    %1203 = vmatpush.msra.mxu0 %v833
    %1204 = vmatpush.msra.mxu0 %v825
    %1205 = vmatpush.msra.mxu0 %v817
    %1206 = vmatpush.msra.mxu0 %v809
    %1207 = vmatpush.msra.mxu0 %v801
    %1208 = vmatpush.msra.mxu0 %v793
    %1209 = vmatpush.msra.mxu0 %v785
    %1210 = vmatpush.msra.mxu0 %v777
    %1211 = vmatpush.msra.mxu0 %v769
    %1212 = vmatpush.msra.mxu0 %v761
    %1213 = vmatmul.f32.gmra.mxu0 %v1033
    %v1214 = vpop.f32.mrf.mxu0
    %v1215 = vadd.f32 %v1019, %v1214
    %1216 = vdwg.mxu0
    %1217 = vmatpush.msra.mxu0 %v1009
    %1218 = vmatpush.msra.mxu0 %v1001
    %1219 = vmatpush.msra.mxu0 %v993
    %1220 = vmatpush.msra.mxu0 %v985
    %1221 = vmatpush.msra.mxu0 %v977
    %1222 = vmatpush.msra.mxu0 %v969
    %1223 = vmatpush.msra.mxu0 %v961
    %1224 = vmatpush.msra.mxu0 %v953
    %1225 = vmatpush.msra.mxu0 %v945
    %1226 = vmatpush.msra.mxu0 %v937
    %1227 = vmatpush.msra.mxu0 %v929
    %1228 = vmatpush.msra.mxu0 %v921
    %1229 = vmatpush.msra.mxu0 %v913
    %1230 = vmatpush.msra.mxu0 %v905
    %1231 = vmatpush.msra.mxu0 %v897
    %1232 = vmatpush.msra.mxu0 %v889
    %1233 = vmatmul.f32.gmra.mxu0 %v1034
    %v1234 = vpop.f32.mrf.mxu0
    %v1235 = vadd.f32 %v1215, %v1234
    %1236 = vdwg.mxu0
    %1237 = vmatpush.msra.mxu0 %v882
    %1238 = vmatpush.msra.mxu0 %v874
    %1239 = vmatpush.msra.mxu0 %v866
    %1240 = vmatpush.msra.mxu0 %v858
    %1241 = vmatpush.msra.mxu0 %v850
    %1242 = vmatpush.msra.mxu0 %v842
    %1243 = vmatpush.msra.mxu0 %v834
    %1244 = vmatpush.msra.mxu0 %v826
    %1245 = vmatpush.msra.mxu0 %v818
    %1246 = vmatpush.msra.mxu0 %v810
    %1247 = vmatpush.msra.mxu0 %v802
    %1248 = vmatpush.msra.mxu0 %v794
    %1249 = vmatpush.msra.mxu0 %v786
    %1250 = vmatpush.msra.mxu0 %v778
    %1251 = vmatpush.msra.mxu0 %v770
    %1252 = vmatpush.msra.mxu0 %v762
    %1253 = vmatmul.f32.gmra.mxu0 %v1033
    %v1254 = vpop.f32.mrf.mxu0
    %v1255 = vadd.f32 %v1020, %v1254
    %1256 = vdwg.mxu0
    %1257 = vmatpush.msra.mxu0 %v1010
    %1258 = vmatpush.msra.mxu0 %v1002
    %1259 = vmatpush.msra.mxu0 %v994
    %1260 = vmatpush.msra.mxu0 %v986
    %1261 = vmatpush.msra.mxu0 %v978
    %1262 = vmatpush.msra.mxu0 %v970
    %1263 = vmatpush.msra.mxu0 %v962
    %1264 = vmatpush.msra.mxu0 %v954
    %1265 = vmatpush.msra.mxu0 %v946
    %1266 = vmatpush.msra.mxu0 %v938
    %1267 = vmatpush.msra.mxu0 %v930
    %1268 = vmatpush.msra.mxu0 %v922
    %1269 = vmatpush.msra.mxu0 %v914
    %1270 = vmatpush.msra.mxu0 %v906
    %1271 = vmatpush.msra.mxu0 %v898
    %1272 = vmatpush.msra.mxu0 %v890
    %1273 = vmatmul.f32.gmra.mxu0 %v1034
    %v1274 = vpop.f32.mrf.mxu0
    %v1275 = vadd.f32 %v1255, %v1274
    %1276 = vdwg.mxu0
    %1277 = vmatpush.msra.mxu0 %v883
    %1278 = vmatpush.msra.mxu0 %v875
    %1279 = vmatpush.msra.mxu0 %v867
    %1280 = vmatpush.msra.mxu0 %v859
    %1281 = vmatpush.msra.mxu0 %v851
    %1282 = vmatpush.msra.mxu0 %v843
    %1283 = vmatpush.msra.mxu0 %v835
    %1284 = vmatpush.msra.mxu0 %v827
    %1285 = vmatpush.msra.mxu0 %v819
    %1286 = vmatpush.msra.mxu0 %v811
    %1287 = vmatpush.msra.mxu0 %v803
    %1288 = vmatpush.msra.mxu0 %v795
    %1289 = vmatpush.msra.mxu0 %v787
    %1290 = vmatpush.msra.mxu0 %v779
    %1291 = vmatpush.msra.mxu0 %v771
    %1292 = vmatpush.msra.mxu0 %v763
    %1293 = vmatmul.f32.gmra.mxu0 %v1033
    %v1294 = vpop.f32.mrf.mxu0
    %v1295 = vadd.f32 %v1021, %v1294
    %1296 = vdwg.mxu0
    %1297 = vmatpush.msra.mxu0 %v1011
    %1298 = vmatpush.msra.mxu0 %v1003
    %1299 = vmatpush.msra.mxu0 %v995
    %1300 = vmatpush.msra.mxu0 %v987
    %1301 = vmatpush.msra.mxu0 %v979
    %1302 = vmatpush.msra.mxu0 %v971
    %1303 = vmatpush.msra.mxu0 %v963
    %1304 = vmatpush.msra.mxu0 %v955
    %1305 = vmatpush.msra.mxu0 %v947
    %1306 = vmatpush.msra.mxu0 %v939
    %1307 = vmatpush.msra.mxu0 %v931
    %1308 = vmatpush.msra.mxu0 %v923
    %1309 = vmatpush.msra.mxu0 %v915
    %1310 = vmatpush.msra.mxu0 %v907
    %1311 = vmatpush.msra.mxu0 %v899
    %1312 = vmatpush.msra.mxu0 %v891
    %1313 = vmatmul.f32.gmra.mxu0 %v1034
    %v1314 = vpop.f32.mrf.mxu0
    %v1315 = vadd.f32 %v1295, %v1314
    %1316 = vdwg.mxu0
    %1317 = vmatpush.msra.mxu0 %v884
    %1318 = vmatpush.msra.mxu0 %v876
    %1319 = vmatpush.msra.mxu0 %v868
    %1320 = vmatpush.msra.mxu0 %v860
    %1321 = vmatpush.msra.mxu0 %v852
    %1322 = vmatpush.msra.mxu0 %v844
    %1323 = vmatpush.msra.mxu0 %v836
    %1324 = vmatpush.msra.mxu0 %v828
    %1325 = vmatpush.msra.mxu0 %v820
    %1326 = vmatpush.msra.mxu0 %v812
    %1327 = vmatpush.msra.mxu0 %v804
    %1328 = vmatpush.msra.mxu0 %v796
    %1329 = vmatpush.msra.mxu0 %v788
    %1330 = vmatpush.msra.mxu0 %v780
    %1331 = vmatpush.msra.mxu0 %v772
    %1332 = vmatpush.msra.mxu0 %v764
    %1333 = vmatmul.f32.gmra.mxu0 %v1033
    %v1334 = vpop.f32.mrf.mxu0
    %v1335 = vadd.f32 %v1022, %v1334
    %1336 = vdwg.mxu0
    %1337 = vmatpush.msra.mxu0 %v1012
    %1338 = vmatpush.msra.mxu0 %v1004
    %1339 = vmatpush.msra.mxu0 %v996
    %1340 = vmatpush.msra.mxu0 %v988
    %1341 = vmatpush.msra.mxu0 %v980
    %1342 = vmatpush.msra.mxu0 %v972
    %1343 = vmatpush.msra.mxu0 %v964
    %1344 = vmatpush.msra.mxu0 %v956
    %1345 = vmatpush.msra.mxu0 %v948
    %1346 = vmatpush.msra.mxu0 %v940
    %1347 = vmatpush.msra.mxu0 %v932
    %1348 = vmatpush.msra.mxu0 %v924
    %1349 = vmatpush.msra.mxu0 %v916
    %1350 = vmatpush.msra.mxu0 %v908
    %1351 = vmatpush.msra.mxu0 %v900
    %1352 = vmatpush.msra.mxu0 %v892
    %1353 = vmatmul.f32.gmra.mxu0 %v1034
    %v1354 = vpop.f32.mrf.mxu0
    %v1355 = vadd.f32 %v1335, %v1354
    %1356 = vdwg.mxu0
    %v1357 = vld [vmem:[#allocation12] sm:$0xff]
    %v1358 = vld [vmem:[#allocation12 + $0x8] sm:$0xff]
    %v1359 = vld [vmem:[#allocation12 + $0x10] sm:$0xff]
    %v1360 = vld [vmem:[#allocation12 + $0x18] sm:$0xff]
    %v1361 = vrot.slane %v749, 6
    %1362 = vrot.lane.b32.xlu0 %v1361, 32
    %v1363 = vpop.permute.xlu0 %1362
    %v1364 = vsel %vm129, %v1363, 0
    %1366 = vmatpush.msra.mxu0 0.0
    %1367 = vmatpush.msra.mxu0 0.0
    %1368 = vmatpush.msra.mxu0 0.0
    %1369 = vmatpush.msra.mxu0 0.0
    %1370 = vmatpush.msra.mxu0 0.0
    %1371 = vmatpush.msra.mxu0 0.0
    %1372 = vmatpush.msra.mxu0 0.0
    %1373 = vmatpush.msra.mxu0 0.0
    %1374 = vmatpush.msra.mxu0 0.0
    %1375 = vmatpush.msra.mxu0 0.0
    %1376 = vmatpush.msra.mxu0 0.0
    %1377 = vmatpush.msra.mxu0 0.0
    %1378 = vmatpush.msra.mxu0 %v1360
    %1379 = vmatpush.msra.mxu0 %v1359
    %1380 = vmatpush.msra.mxu0 %v1358
    %1381 = vmatpush.msra.mxu0 %v1357
    %1382 = vmatmul.f32.gmra.mxu0 %v1364
    %v1383 = vpop.f32.mrf.mxu0
    %v1384 = vadd.f32 0.0, %v1383
    %1385 = vdwg.mxu0
    %v1386 = vadd.f32 %v1075, %v1384
    %v1387 = vxor.u32 %v1386, 2147483648
    %v1388 = vmul.f32 %v1387, 1.442695
    %v1389 = vpow.pop %v1388
    %v1390 = vadd.f32 %v1389, 1.0
    %v1391 = vrcp.pop %v1390
    %v1392 = vmul.f32 %v1390, %v1391
    %v1393 = vsub.f32 1.0, %v1392
    %v1394 = vmul.f32 %v1391, %v1393
    %v1395 = vadd.f32 %v1391, %v1394
    %vm1396 = vweird.f32 %v1390
    %vm1397 = vweird.f32 %v1391
    %vm1398 = vmor %vm1396, %vm1397
    %v1399 = vsel %vm1398, %v1391, %v1395
    %v1400 = vand.u32 2147483647, %v1390
    %vm1401 = vcmp.eq.f32.partialorder %v1400, 8.507059e+37
    %v1402 = vand.u32 %v1390, 2147483648
    %v1403 = vor.u32 1.1754944e-38, %v1402
    %v1404 = vsel %vm1401, %v1403, %v1399
    %v1405 = vmul.f32 1.0, %v1404
    %v1406 = vtanh.pop %v1386
    %v1408 = vrot.slane %v743, 6
    %v1410 = vmul.f32 %v1405, %v1408
    %1412 = vrot.lane.b32.xlu0 %v1406, 64
    %v1413 = vpop.permute.xlu0 %1412
    %v1415 = vmul.f32 %v1405, %v1413
    %1417 = vrot.lane.b32.xlu0 %v1415, 32
    %v1418 = vpop.permute.xlu0 %1417
    %v1420 = vadd.f32 %v1410, %v1418
    %v1421 = vtanh.pop %v1420
    %1423 = vrot.lane.b32.xlu0 %v1421, 64
    %v1424 = vpop.permute.xlu0 %1423
    %v1426 = vmul.f32 %v1405, %v1424
    %1428 = vrot.lane.b32.xlu0 %v1426, 32
    %v1429 = vpop.permute.xlu0 %1428
    %1431 = vst.msk [vmem:[#allocation14] sm:$0x3] %vm228, %v1429
    %v1432 = vsel %vm129, %v1429, 0
    %1434 = vmatpush.msra.mxu0 0.0
    %1435 = vmatpush.msra.mxu0 0.0
    %1436 = vmatpush.msra.mxu0 0.0
    %1437 = vmatpush.msra.mxu0 0.0
    %1438 = vmatpush.msra.mxu0 0.0
    %1439 = vmatpush.msra.mxu0 0.0
    %1440 = vmatpush.msra.mxu0 0.0
    %1441 = vmatpush.msra.mxu0 0.0
    %1442 = vmatpush.msra.mxu0 0.0
    %1443 = vmatpush.msra.mxu0 0.0
    %1444 = vmatpush.msra.mxu0 0.0
    %1445 = vmatpush.msra.mxu0 0.0
    %1446 = vmatpush.msra.mxu0 %v1360
    %1447 = vmatpush.msra.mxu0 %v1359
    %1448 = vmatpush.msra.mxu0 %v1358
    %1449 = vmatpush.msra.mxu0 %v1357
    %1450 = vmatmul.f32.gmra.mxu0 %v1432
    %v1451 = vpop.f32.mrf.mxu0
    %v1452 = vadd.f32 0.0, %v1451
    %1453 = vdwg.mxu0
    %v1454 = vadd.f32 %v1115, %v1452
    %v1455 = vxor.u32 %v1454, 2147483648
    %v1456 = vmul.f32 %v1455, 1.442695
    %v1457 = vpow.pop %v1456
    %v1458 = vadd.f32 %v1457, 1.0
    %v1459 = vrcp.pop %v1458
    %v1460 = vmul.f32 %v1458, %v1459
    %v1461 = vsub.f32 1.0, %v1460
    %v1462 = vmul.f32 %v1459, %v1461
    %v1463 = vadd.f32 %v1459, %v1462
    %vm1464 = vweird.f32 %v1458
    %vm1465 = vweird.f32 %v1459
    %vm1466 = vmor %vm1464, %vm1465
    %v1467 = vsel %vm1466, %v1459, %v1463
    %v1468 = vand.u32 2147483647, %v1458
    %vm1469 = vcmp.eq.f32.partialorder %v1468, 8.507059e+37
    %v1470 = vand.u32 %v1458, 2147483648
    %v1471 = vor.u32 1.1754944e-38, %v1470
    %v1472 = vsel %vm1469, %v1471, %v1467
    %v1473 = vmul.f32 1.0, %v1472
    %v1474 = vtanh.pop %v1454
    %v1475 = vmul.f32 %v1473, %v1420
    %1477 = vrot.lane.b32.xlu0 %v1474, 64
    %v1478 = vpop.permute.xlu0 %1477
    %v1480 = vmul.f32 %v1473, %v1478
    %1482 = vrot.lane.b32.xlu0 %v1480, 32
    %v1483 = vpop.permute.xlu0 %1482
    %v1485 = vadd.f32 %v1475, %v1483
    %v1486 = vtanh.pop %v1485
    %1488 = vrot.lane.b32.xlu0 %v1486, 64
    %v1489 = vpop.permute.xlu0 %1488
    %v1491 = vmul.f32 %v1473, %v1489
    %1493 = vrot.lane.b32.xlu0 %v1491, 64
    %v1494 = vpop.permute.xlu0 %1493
    %1496 = vst.msk [vmem:[#allocation14] sm:$0x3] %vm303, %v1494
    %1497 = vrot.lane.b32.xlu0 %v1491, 32
    %v1498 = vpop.permute.xlu0 %1497
    %v1499 = vsel %vm129, %v1498, 0
    %1501 = vmatpush.msra.mxu0 0.0
    %1502 = vmatpush.msra.mxu0 0.0
    %1503 = vmatpush.msra.mxu0 0.0
    %1504 = vmatpush.msra.mxu0 0.0
    %1505 = vmatpush.msra.mxu0 0.0
    %1506 = vmatpush.msra.mxu0 0.0
    %1507 = vmatpush.msra.mxu0 0.0
    %1508 = vmatpush.msra.mxu0 0.0
    %1509 = vmatpush.msra.mxu0 0.0
    %1510 = vmatpush.msra.mxu0 0.0
    %1511 = vmatpush.msra.mxu0 0.0
    %1512 = vmatpush.msra.mxu0 0.0
    %1513 = vmatpush.msra.mxu0 %v1360
    %1514 = vmatpush.msra.mxu0 %v1359
    %1515 = vmatpush.msra.mxu0 %v1358
    %1516 = vmatpush.msra.mxu0 %v1357
    %1517 = vmatmul.f32.gmra.mxu0 %v1499
    %v1518 = vpop.f32.mrf.mxu0
    %v1519 = vadd.f32 0.0, %v1518
    %1520 = vdwg.mxu0
    %v1521 = vadd.f32 %v1155, %v1519
    %v1522 = vxor.u32 %v1521, 2147483648
    %v1523 = vmul.f32 %v1522, 1.442695
    %v1524 = vpow.pop %v1523
    %v1525 = vadd.f32 %v1524, 1.0
    %v1526 = vrcp.pop %v1525
    %v1527 = vmul.f32 %v1525, %v1526
    %v1528 = vsub.f32 1.0, %v1527
    %v1529 = vmul.f32 %v1526, %v1528
    %v1530 = vadd.f32 %v1526, %v1529
    %vm1531 = vweird.f32 %v1525
    %vm1532 = vweird.f32 %v1526
    %vm1533 = vmor %vm1531, %vm1532
    %v1534 = vsel %vm1533, %v1526, %v1530
    %v1535 = vand.u32 2147483647, %v1525
    %vm1536 = vcmp.eq.f32.partialorder %v1535, 8.507059e+37
    %v1537 = vand.u32 %v1525, 2147483648
    %v1538 = vor.u32 1.1754944e-38, %v1537
    %v1539 = vsel %vm1536, %v1538, %v1534
    %v1540 = vmul.f32 1.0, %v1539
    %v1541 = vtanh.pop %v1521
    %v1542 = vmul.f32 %v1540, %v1485
    %1544 = vrot.lane.b32.xlu0 %v1541, 64
    %v1545 = vpop.permute.xlu0 %1544
    %v1547 = vmul.f32 %v1540, %v1545
    %1549 = vrot.lane.b32.xlu0 %v1547, 32
    %v1550 = vpop.permute.xlu0 %1549
    %v1552 = vadd.f32 %v1542, %v1550
    %v1553 = vtanh.pop %v1552
    %1555 = vrot.lane.b32.xlu0 %v1553, 64
    %v1556 = vpop.permute.xlu0 %1555
    %v1558 = vmul.f32 %v1540, %v1556
    %1560 = vrot.lane.b32.xlu0 %v1558, 96
    %v1561 = vpop.permute.xlu0 %1560
    %1563 = vst.msk [vmem:[#allocation14] sm:$0x3] %vm381, %v1561
    %1564 = vrot.lane.b32.xlu0 %v1558, 32
    %v1565 = vpop.permute.xlu0 %1564
    %v1566 = vsel %vm129, %v1565, 0
    %1568 = vmatpush.msra.mxu0 0.0
    %1569 = vmatpush.msra.mxu0 0.0
    %1570 = vmatpush.msra.mxu0 0.0
    %1571 = vmatpush.msra.mxu0 0.0
    %1572 = vmatpush.msra.mxu0 0.0
    %1573 = vmatpush.msra.mxu0 0.0
    %1574 = vmatpush.msra.mxu0 0.0
    %1575 = vmatpush.msra.mxu0 0.0
    %1576 = vmatpush.msra.mxu0 0.0
    %1577 = vmatpush.msra.mxu0 0.0
    %1578 = vmatpush.msra.mxu0 0.0
    %1579 = vmatpush.msra.mxu0 0.0
    %1580 = vmatpush.msra.mxu0 %v1360
    %1581 = vmatpush.msra.mxu0 %v1359
    %1582 = vmatpush.msra.mxu0 %v1358
    %1583 = vmatpush.msra.mxu0 %v1357
    %1584 = vmatmul.f32.gmra.mxu0 %v1566
    %v1585 = vpop.f32.mrf.mxu0
    %v1586 = vadd.f32 0.0, %v1585
    %1587 = vdwg.mxu0
    %v1588 = vadd.f32 %v1195, %v1586
    %v1589 = vxor.u32 %v1588, 2147483648
    %v1590 = vmul.f32 %v1589, 1.442695
    %v1591 = vpow.pop %v1590
    %v1592 = vadd.f32 %v1591, 1.0
    %v1593 = vrcp.pop %v1592
    %v1594 = vmul.f32 %v1592, %v1593
    %v1595 = vsub.f32 1.0, %v1594
    %v1596 = vmul.f32 %v1593, %v1595
    %v1597 = vadd.f32 %v1593, %v1596
    %vm1598 = vweird.f32 %v1592
    %vm1599 = vweird.f32 %v1593
    %vm1600 = vmor %vm1598, %vm1599
    %v1601 = vsel %vm1600, %v1593, %v1597
    %v1602 = vand.u32 2147483647, %v1592
    %vm1603 = vcmp.eq.f32.partialorder %v1602, 8.507059e+37
    %v1604 = vand.u32 %v1592, 2147483648
    %v1605 = vor.u32 1.1754944e-38, %v1604
    %v1606 = vsel %vm1603, %v1605, %v1601
    %v1607 = vmul.f32 1.0, %v1606
    %v1608 = vtanh.pop %v1588
    %v1609 = vmul.f32 %v1607, %v1552
    %1611 = vrot.lane.b32.xlu0 %v1608, 64
    %v1612 = vpop.permute.xlu0 %1611
    %v1614 = vmul.f32 %v1607, %v1612
    %1616 = vrot.lane.b32.xlu0 %v1614, 32
    %v1617 = vpop.permute.xlu0 %1616
    %v1619 = vadd.f32 %v1609, %v1617
    %v1620 = vtanh.pop %v1619
    %1622 = vrot.lane.b32.xlu0 %v1620, 64
    %v1623 = vpop.permute.xlu0 %1622
    %v1625 = vmul.f32 %v1607, %v1623
    %1626 = vst.msk [vmem:[#allocation14] sm:$0x3] %vm457, %v1625
    %1628 = vrot.lane.b32.xlu0 %v1625, 32
    %v1629 = vpop.permute.xlu0 %1628
    %v1630 = vsel %vm129, %v1629, 0
    %1632 = vmatpush.msra.mxu0 0.0
    %1633 = vmatpush.msra.mxu0 0.0
    %1634 = vmatpush.msra.mxu0 0.0
    %1635 = vmatpush.msra.mxu0 0.0
    %1636 = vmatpush.msra.mxu0 0.0
    %1637 = vmatpush.msra.mxu0 0.0
    %1638 = vmatpush.msra.mxu0 0.0
    %1639 = vmatpush.msra.mxu0 0.0
    %1640 = vmatpush.msra.mxu0 0.0
    %1641 = vmatpush.msra.mxu0 0.0
    %1642 = vmatpush.msra.mxu0 0.0
    %1643 = vmatpush.msra.mxu0 0.0
    %1644 = vmatpush.msra.mxu0 %v1360
    %1645 = vmatpush.msra.mxu0 %v1359
    %1646 = vmatpush.msra.mxu0 %v1358
    %1647 = vmatpush.msra.mxu0 %v1357
    %1648 = vmatmul.f32.gmra.mxu0 %v1630
    %v1649 = vpop.f32.mrf.mxu0
    %v1650 = vadd.f32 0.0, %v1649
    %1651 = vdwg.mxu0
    %v1652 = vadd.f32 %v1235, %v1650
    %v1653 = vxor.u32 %v1652, 2147483648
    %v1654 = vmul.f32 %v1653, 1.442695
    %v1655 = vpow.pop %v1654
    %v1656 = vadd.f32 %v1655, 1.0
    %v1657 = vrcp.pop %v1656
    %v1658 = vmul.f32 %v1656, %v1657
    %v1659 = vsub.f32 1.0, %v1658
    %v1660 = vmul.f32 %v1657, %v1659
    %v1661 = vadd.f32 %v1657, %v1660
    %vm1662 = vweird.f32 %v1656
    %vm1663 = vweird.f32 %v1657
    %vm1664 = vmor %vm1662, %vm1663
    %v1665 = vsel %vm1664, %v1657, %v1661
    %v1666 = vand.u32 2147483647, %v1656
    %vm1667 = vcmp.eq.f32.partialorder %v1666, 8.507059e+37
    %v1668 = vand.u32 %v1656, 2147483648
    %v1669 = vor.u32 1.1754944e-38, %v1668
    %v1670 = vsel %vm1667, %v1669, %v1665
    %v1671 = vmul.f32 1.0, %v1670
    %v1672 = vtanh.pop %v1652
    %v1673 = vmul.f32 %v1671, %v1619
    %1675 = vrot.lane.b32.xlu0 %v1672, 64
    %v1676 = vpop.permute.xlu0 %1675
    %v1678 = vmul.f32 %v1671, %v1676
    %1680 = vrot.lane.b32.xlu0 %v1678, 32
    %v1681 = vpop.permute.xlu0 %1680
    %v1683 = vadd.f32 %v1673, %v1681
    %v1684 = vtanh.pop %v1683
    %1686 = vrot.lane.b32.xlu0 %v1684, 64
    %v1687 = vpop.permute.xlu0 %1686
    %v1689 = vmul.f32 %v1671, %v1687
    %1691 = vrot.lane.b32.xlu0 %v1689, 32
    %v1692 = vpop.permute.xlu0 %1691
    %1694 = vst.msk [vmem:[#allocation14 + $0x2] sm:$0x3] %vm228, %v1692
    %v1695 = vsel %vm129, %v1692, 0
    %1697 = vmatpush.msra.mxu0 0.0
    %1698 = vmatpush.msra.mxu0 0.0
    %1699 = vmatpush.msra.mxu0 0.0
    %1700 = vmatpush.msra.mxu0 0.0
    %1701 = vmatpush.msra.mxu0 0.0
    %1702 = vmatpush.msra.mxu0 0.0
    %1703 = vmatpush.msra.mxu0 0.0
    %1704 = vmatpush.msra.mxu0 0.0
    %1705 = vmatpush.msra.mxu0 0.0
    %1706 = vmatpush.msra.mxu0 0.0
    %1707 = vmatpush.msra.mxu0 0.0
    %1708 = vmatpush.msra.mxu0 0.0
    %1709 = vmatpush.msra.mxu0 %v1360
    %1710 = vmatpush.msra.mxu0 %v1359
    %1711 = vmatpush.msra.mxu0 %v1358
    %1712 = vmatpush.msra.mxu0 %v1357
    %1713 = vmatmul.f32.gmra.mxu0 %v1695
    %v1714 = vpop.f32.mrf.mxu0
    %v1715 = vadd.f32 0.0, %v1714
    %1716 = vdwg.mxu0
    %v1717 = vadd.f32 %v1275, %v1715
    %v1718 = vxor.u32 %v1717, 2147483648
    %v1719 = vmul.f32 %v1718, 1.442695
    %v1720 = vpow.pop %v1719
    %v1721 = vadd.f32 %v1720, 1.0
    %v1722 = vrcp.pop %v1721
    %v1723 = vmul.f32 %v1721, %v1722
    %v1724 = vsub.f32 1.0, %v1723
    %v1725 = vmul.f32 %v1722, %v1724
    %v1726 = vadd.f32 %v1722, %v1725
    %vm1727 = vweird.f32 %v1721
    %vm1728 = vweird.f32 %v1722
    %vm1729 = vmor %vm1727, %vm1728
    %v1730 = vsel %vm1729, %v1722, %v1726
    %v1731 = vand.u32 2147483647, %v1721
    %vm1732 = vcmp.eq.f32.partialorder %v1731, 8.507059e+37
    %v1733 = vand.u32 %v1721, 2147483648
    %v1734 = vor.u32 1.1754944e-38, %v1733
    %v1735 = vsel %vm1732, %v1734, %v1730
    %v1736 = vmul.f32 1.0, %v1735
    %v1737 = vtanh.pop %v1717
    %v1738 = vmul.f32 %v1736, %v1683
    %1740 = vrot.lane.b32.xlu0 %v1737, 64
    %v1741 = vpop.permute.xlu0 %1740
    %v1743 = vmul.f32 %v1736, %v1741
    %1745 = vrot.lane.b32.xlu0 %v1743, 32
    %v1746 = vpop.permute.xlu0 %1745
    %v1748 = vadd.f32 %v1738, %v1746
    %v1749 = vtanh.pop %v1748
    %1751 = vrot.lane.b32.xlu0 %v1749, 64
    %v1752 = vpop.permute.xlu0 %1751
    %v1754 = vmul.f32 %v1736, %v1752
    %1756 = vrot.lane.b32.xlu0 %v1754, 64
    %v1757 = vpop.permute.xlu0 %1756
    %1759 = vst.msk [vmem:[#allocation14 + $0x2] sm:$0x3] %vm303, %v1757
    %1760 = vrot.lane.b32.xlu0 %v1754, 32
    %v1761 = vpop.permute.xlu0 %1760
    %v1762 = vsel %vm129, %v1761, 0
    %1764 = vmatpush.msra.mxu0 0.0
    %1765 = vmatpush.msra.mxu0 0.0
    %1766 = vmatpush.msra.mxu0 0.0
    %1767 = vmatpush.msra.mxu0 0.0
    %1768 = vmatpush.msra.mxu0 0.0
    %1769 = vmatpush.msra.mxu0 0.0
    %1770 = vmatpush.msra.mxu0 0.0
    %1771 = vmatpush.msra.mxu0 0.0
    %1772 = vmatpush.msra.mxu0 0.0
    %1773 = vmatpush.msra.mxu0 0.0
    %1774 = vmatpush.msra.mxu0 0.0
    %1775 = vmatpush.msra.mxu0 0.0
    %1776 = vmatpush.msra.mxu0 %v1360
    %1777 = vmatpush.msra.mxu0 %v1359
    %1778 = vmatpush.msra.mxu0 %v1358
    %1779 = vmatpush.msra.mxu0 %v1357
    %1780 = vmatmul.f32.gmra.mxu0 %v1762
    %v1781 = vpop.f32.mrf.mxu0
    %v1782 = vadd.f32 0.0, %v1781
    %1783 = vdwg.mxu0
    %v1784 = vadd.f32 %v1315, %v1782
    %v1785 = vxor.u32 %v1784, 2147483648
    %v1786 = vmul.f32 %v1785, 1.442695
    %v1787 = vpow.pop %v1786
    %v1788 = vadd.f32 %v1787, 1.0
    %v1789 = vrcp.pop %v1788
    %v1790 = vmul.f32 %v1788, %v1789
    %v1791 = vsub.f32 1.0, %v1790
    %v1792 = vmul.f32 %v1789, %v1791
    %v1793 = vadd.f32 %v1789, %v1792
    %vm1794 = vweird.f32 %v1788
    %vm1795 = vweird.f32 %v1789
    %vm1796 = vmor %vm1794, %vm1795
    %v1797 = vsel %vm1796, %v1789, %v1793
    %v1798 = vand.u32 2147483647, %v1788
    %vm1799 = vcmp.eq.f32.partialorder %v1798, 8.507059e+37
    %v1800 = vand.u32 %v1788, 2147483648
    %v1801 = vor.u32 1.1754944e-38, %v1800
    %v1802 = vsel %vm1799, %v1801, %v1797
    %v1803 = vmul.f32 1.0, %v1802
    %v1804 = vtanh.pop %v1784
    %v1805 = vmul.f32 %v1803, %v1748
    %1807 = vrot.lane.b32.xlu0 %v1804, 64
    %v1808 = vpop.permute.xlu0 %1807
    %v1810 = vmul.f32 %v1803, %v1808
    %1812 = vrot.lane.b32.xlu0 %v1810, 32
    %v1813 = vpop.permute.xlu0 %1812
    %v1815 = vadd.f32 %v1805, %v1813
    %v1816 = vtanh.pop %v1815
    %1818 = vrot.lane.b32.xlu0 %v1816, 64
    %v1819 = vpop.permute.xlu0 %1818
    %v1821 = vmul.f32 %v1803, %v1819
    %1823 = vrot.lane.b32.xlu0 %v1821, 96
    %v1824 = vpop.permute.xlu0 %1823
    %1826 = vst.msk [vmem:[#allocation14 + $0x2] sm:$0x3] %vm381, %v1824
    %1827 = vrot.lane.b32.xlu0 %v1821, 32
    %v1828 = vpop.permute.xlu0 %1827
    %v1829 = vsel %vm129, %v1828, 0
    %1831 = vmatpush.msra.mxu0 0.0
    %1832 = vmatpush.msra.mxu0 0.0
    %1833 = vmatpush.msra.mxu0 0.0
    %1834 = vmatpush.msra.mxu0 0.0
    %1835 = vmatpush.msra.mxu0 0.0
    %1836 = vmatpush.msra.mxu0 0.0
    %1837 = vmatpush.msra.mxu0 0.0
    %1838 = vmatpush.msra.mxu0 0.0
    %1839 = vmatpush.msra.mxu0 0.0
    %1840 = vmatpush.msra.mxu0 0.0
    %1841 = vmatpush.msra.mxu0 0.0
    %1842 = vmatpush.msra.mxu0 0.0
    %1843 = vmatpush.msra.mxu0 %v1360
    %1844 = vmatpush.msra.mxu0 %v1359
    %1845 = vmatpush.msra.mxu0 %v1358
    %1846 = vmatpush.msra.mxu0 %v1357
    %1847 = vmatmul.f32.gmra.mxu0 %v1829
    %v1848 = vpop.f32.mrf.mxu0
    %v1849 = vadd.f32 0.0, %v1848
    %1850 = vdwg.mxu0
    %v1851 = vadd.f32 %v1355, %v1849
    %v1852 = vxor.u32 %v1851, 2147483648
    %v1853 = vmul.f32 %v1852, 1.442695
    %v1854 = vpow.pop %v1853
    %v1855 = vadd.f32 %v1854, 1.0
    %v1856 = vrcp.pop %v1855
    %v1857 = vmul.f32 %v1855, %v1856
    %v1858 = vsub.f32 1.0, %v1857
    %v1859 = vmul.f32 %v1856, %v1858
    %v1860 = vadd.f32 %v1856, %v1859
    %vm1861 = vweird.f32 %v1855
    %vm1862 = vweird.f32 %v1856
    %vm1863 = vmor %vm1861, %vm1862
    %v1864 = vsel %vm1863, %v1856, %v1860
    %v1865 = vand.u32 2147483647, %v1855
    %vm1866 = vcmp.eq.f32.partialorder %v1865, 8.507059e+37
    %v1867 = vand.u32 %v1855, 2147483648
    %v1868 = vor.u32 1.1754944e-38, %v1867
    %v1869 = vsel %vm1866, %v1868, %v1864
    %v1870 = vmul.f32 1.0, %v1869
    %v1871 = vtanh.pop %v1851
    %v1872 = vmul.f32 %v1870, %v1815
    %1874 = vrot.lane.b32.xlu0 %v1871, 64
    %v1875 = vpop.permute.xlu0 %1874
    %v1877 = vmul.f32 %v1870, %v1875
    %1879 = vrot.lane.b32.xlu0 %v1877, 32
    %v1880 = vpop.permute.xlu0 %1879
    %v1882 = vadd.f32 %v1872, %v1880
    %v1883 = vtanh.pop %v1882
    %1885 = vrot.lane.b32.xlu0 %v1883, 64
    %v1886 = vpop.permute.xlu0 %1885
    %v1888 = vmul.f32 %v1870, %v1886
    %1889 = vst.msk [vmem:[#allocation14 + $0x2] sm:$0x3] %vm457, %v1888
    // Predicated region
    $region54: #{tpu_custom_call.1} parent=1 // pred_check
      _
    $region55: #{tpu_custom_call.1} parent=1 // pred_check_branch
      %1891 = sbr.rel (0) target = $region57
    $region56: #{tpu_custom_call.1} parent=1 // pred_region
      %1893 = vsyncadd [#allocation5], 0
      %s1895 = sshll.u32 [#allocation14], 4
      %s1896 = int_to_ptr.vmem [resolvable:$true] %s1895
      %s1897 = sshll.u32 %s7, 4
      %s1898 = int_to_ptr.hbm [resolvable:$true] %s1897
      %1900 = dma.vmem_to_hbm [thread:$0]  %s1896, 64, %s1898, [#allocation5]
    $region57: #{tpu_custom_call.1} parent=1 // pred_fallthru
      _
    // Predicated region
    $region58: #{tpu_custom_call.1} parent=1 // pred_check
      _
    $region59: #{tpu_custom_call.1} parent=1 // pred_check_branch
      %1902 = sbr.rel (0) target = $region61
    $region60: #{tpu_custom_call.1} parent=1 // pred_region
      %1904 = dma.done [#allocation5], 64
    $region61: #{tpu_custom_call.1} parent=1 // pred_fallthru
      _
    %1905 = vsyncpa [#allocation4], 1
    %1906 = vsyncpa [#allocation7], 1
    %1907 = vsyncpa [#allocation10], 1
    %1908 = vsyncpa [#allocation13], 1
    %1909 = vsyncpa [#allocation5], 1

</llo_original>
